<compile_context>
chip_gen: v5e
topology: v5e:2x2
jax: 0.10.0
libtpu: 0.0.40
codegen_flags: <defaults>
</compile_context>

<pallas_src>
import functools

import jax
import jax.numpy as jnp
import numpy as np
from jax.experimental import pallas as pl
from jax.experimental.pallas import tpu as pltpu


# ----------------------------------------------------------------------------
# Kernels
# ----------------------------------------------------------------------------
def _gfft_kernel_tiled(x_ref, b_ref, o_ref):
    """Column-tiled path: one [tb, tn] output tile per grid step.

    Grid axis 0 has 2*nn steps: j in [0, nn) writes the sin half, j in
    [nn, 2*nn) writes the cos half of the flat [batch, 2M] output.
    """
    j = pl.program_id(0)
    nn = pl.num_programs(0) // 2
    proj = jnp.dot(x_ref[...], b_ref[...],
                   preferred_element_type=jnp.float32)        # [tb, tn]

    @pl.when(j < nn)
    def _():
        o_ref[...] = jnp.sin(proj).astype(o_ref.dtype)

    @pl.when(j >= nn)
    def _():
        o_ref[...] = jnp.cos(proj).astype(o_ref.dtype)


def _gfft_kernel_fullwidth(x_ref, b_ref, o_ref):
    """Fallback when M % 128 != 0: single full-width [tb, 2M] output block."""
    m = b_ref.shape[1]
    proj = jnp.dot(x_ref[...], b_ref[...],
                   preferred_element_type=jnp.float32)        # [tb, M]
    # Two static-slice slab writes -- no concatenate buffer in the hot path.
    o_ref[:, :m] = jnp.sin(proj).astype(o_ref.dtype)
    o_ref[:, m:] = jnp.cos(proj).astype(o_ref.dtype)


# ----------------------------------------------------------------------------
# Tiling helpers + pallas_call wrapper
# ----------------------------------------------------------------------------
def _round_up(v, m):
    return ((v + m - 1) // m) * m


def _pick_col_tile(m, target=1024):
    """Largest multiple of 128 that divides m and is <= target (m % 128 == 0)."""
    best = 128
    t = 256
    while t <= min(m, target):
        if m % t == 0:
            best = t
        t += 128
    return best


@functools.partial(jax.jit, static_argnames=("out_dtype", "tb", "tn"))
def _gfft_forward(x2, B, *, out_dtype=np.dtype("float32"), tb=None, tn=None):
    """Returns feat with feat[:, :M] = sin(x2 @ B), feat[:, M:] = cos(x2 @ B)."""
    batch, d = x2.shape
    M = B.shape[1]

    # ---- column tiling ------------------------------------------------------
    tiled = (M % 128 == 0)
    if tiled:
        if tn is None:
            tn = _pick_col_tile(M, target=1024)
        assert M % tn == 0 and tn % 128 == 0
        nn = M // tn
        out_block_cols = tn
    else:
        tn = M
        nn = 1
        out_block_cols = 2 * M

    # ---- batch tiling -------------------------------------------------------
    if tb is None:
        # ~2 MiB output block: double-buffered working set stays comfortably
        # under the scoped VMEM limit on every generation while still giving
        # large, unmasked lane-dense stores near the HBM roofline.
        tb = (2 << 20) // (out_block_cols * 4)
        tb = min(512, max(8, (tb // 8) * 8))
    tb = max(8, (min(tb, _round_up(batch, 8)) // 8) * 8)
    nb = (batch + tb - 1) // tb
    batch_pad = nb * tb
    if batch_pad != batch:
        # Pad instead of floor-dividing the grid: no dropped remainder rows.
        x2 = jnp.pad(x2, ((0, batch_pad - batch), (0, 0)))

    # ---- VMEM budget (explicit, so v5e's 16 MiB default / v7x's 64 MiB
    # physical never silently bite) ------------------------------------------
    io_bytes = 2 * 4 * (tb * d + d * tn + tb * out_block_cols)  # double-buffered DMA blocks
    tmp_bytes = 3 * 4 * tb * tn                                 # proj + sin/cos temporaries
    vmem_limit = int(min(32 << 20, max(16 << 20, 2 * (io_bytes + tmp_bytes))))

    if tiled:
        grid = (2 * nn, nb)   # column tiles OUTER (each B tile DMA'd once),
                              # batch tiles INNER (fastest-varying)
        in_specs = [
            pl.BlockSpec((tb, d), lambda j, i: (i, 0)),
            pl.BlockSpec((d, tn), lambda j, i, nn=nn: (0, j % nn)),
        ]
        out_specs = pl.BlockSpec((tb, tn), lambda j, i: (i, j))
        kernel = _gfft_kernel_tiled
        dim_sem = ("parallel", "parallel")
    else:
        grid = (nb,)
        in_specs = [
            pl.BlockSpec((tb, d), lambda i: (i, 0)),
            pl.BlockSpec((d, M), lambda i: (0, 0)),
        ]
        out_specs = pl.BlockSpec((tb, 2 * M), lambda i: (i, 0))
        kernel = _gfft_kernel_fullwidth
        dim_sem = ("parallel",)

    feat = pl.pallas_call(
        kernel,
        out_shape=jax.ShapeDtypeStruct((batch_pad, 2 * M), out_dtype),
        grid_spec=pltpu.PrefetchScalarGridSpec(
            num_scalar_prefetch=0,
            grid=grid,
            in_specs=in_specs,
            out_specs=out_specs,
        ),
        compiler_params=pltpu.CompilerParams(
            dimension_semantics=dim_sem,
            vmem_limit_bytes=vmem_limit),
    )(x2, B)

    if batch_pad != batch:
        feat = feat[:batch]
    return feat


# ----------------------------------------------------------------------------
# Module
# ----------------------------------------------------------------------------
class GaussianFourierFeatureTransform:
    """JAX/Pallas re-implementation of the PyTorch module (forward only)."""

    def __init__(self, input_dim, mapping_size=256, scale=10,
                 deterministic=False, append_raw=False, key=None,
                 out_dtype=jnp.float32):
        self.input_dim = input_dim
        self.deterministic = deterministic
        self.out_dtype = np.dtype(out_dtype)  # bf16 optional (halves HBM writes)
        if deterministic:
            # scale * cat([i * eye(d) for i in 1..mapping_size], dim=0).T
            #   == B[:, (i-1)*d : i*d] = scale * i * eye(d)
            freqs = float(scale) * jnp.arange(1, mapping_size + 1, dtype=jnp.float32)
            eye = jnp.eye(input_dim, dtype=jnp.float32)
            self._B = (freqs[None, :, None] * eye[:, None, :]).reshape(
                input_dim, input_dim * mapping_size)
            self._mapping_size = input_dim * mapping_size
            # TODO(synk): deterministic B is block-diagonal (1/input_dim dense); a
            # VPU broadcast-multiply could skip the MXU and the B DMA entirely, but
            # the kernel stays HBM-write bound so the matmul is kept (each B tile
            # is fetched only once per call thanks to the grid ordering).
        else:
            # torch.randn draw replaced by a deterministic jax PRNG draw (same
            # distribution, different numbers -- by design).
            key = jax.random.PRNGKey(0) if key is None else key
            self._B = (2.0 * jnp.pi * float(scale) *
                       jax.random.normal(key, (input_dim, mapping_size),
                                         dtype=jnp.float32))
            self._mapping_size = mapping_size
        self.feature_dim = 2 * self._mapping_size
        self.append_raw = append_raw
        if append_raw:
            self.feature_dim += input_dim

    def __call__(self, x):
        assert x.ndim in (2, 3), f'Expected 2D or 3D input (got {x.ndim}D input)'
        if x.ndim == 3:
            b, n, d = x.shape
            assert n * d == self.input_dim
            x = x.reshape(b, n * d)
        else:
            assert x.shape[1] == self.input_dim
        x = x.astype(jnp.float32)
        feat = _gfft_forward(x, self._B, out_dtype=self.out_dtype)
        if self.append_raw:
            # TODO(synk): fold the raw-x tail columns into the kernel output
            # (flat [batch, 2M + input_dim] layout) to avoid this extra HBM
            # round-trip of the feature tensor on the append_raw path.
            feat = jnp.concatenate([feat, x.astype(feat.dtype)], axis=1)
        return feat


# ----------------------------------------------------------------------------
# Reference + tests
# ----------------------------------------------------------------------------
def _reference(x, B, append_raw):
    x2 = x.reshape(x.shape[0], -1).astype(jnp.float32)
    proj = x2 @ B
    feat = jnp.concatenate([jnp.sin(proj), jnp.cos(proj)], axis=1)
    if append_raw:
        feat = jnp.concatenate([feat, x2], axis=1)
    return feat


if __name__ == "__main__":
    key = jax.random.PRNGKey(0)
    kx1, kx2, kx3, kb = jax.random.split(key, 4)

    # 1) Random B, 3-D input [batch, n_particles, dims], column-tiled path.
    batches, n_particles, dims = 16, 2, 2
    input_dim = n_particles * dims
    x3 = jax.random.normal(kx1, (batches, n_particles, dims), dtype=jnp.float32)
    mod = GaussianFourierFeatureTransform(input_dim, mapping_size=256, scale=10,
                                          key=kb)
    out = jax.block_until_ready(mod(x3))
    assert out.shape == (batches, 512)
    np.testing.assert_allclose(np.asarray(out),
                               np.asarray(_reference(x3, mod._B, False)),
                               rtol=1e-4, atol=1e-4)

    # 2) append_raw + 2-D ragged batch (exercises batch padding + tail slice).
    mod2 = GaussianFourierFeatureTransform(input_dim, mapping_size=256, scale=10,
                                           append_raw=True, key=kb)
    x2d = jax.random.normal(kx2, (10, input_dim), dtype=jnp.float32)
    out2 = jax.block_until_ready(mod2(x2d))
    assert out2.shape == (10, 512 + input_dim)
    np.testing.assert_allclose(np.asarray(out2),
                               np.asarray(_reference(x2d, mod2._B, True)),
                               rtol=1e-4, atol=1e-4)

    # 3) Deterministic block-diagonal B: M = input_dim * mapping_size = 2048
    #    -> exercises column tiling with more than one B tile (tn=1024, nn=2).
    mod3 = GaussianFourierFeatureTransform(input_dim, mapping_size=512, scale=1,
                                           deterministic=True)
    out3 = jax.block_until_ready(mod3(x3))
    assert out3.shape == (batches, 2 * input_dim * 512)
    np.testing.assert_allclose(np.asarray(out3),
                               np.asarray(_reference(x3, mod3._B, False)),
                               rtol=1e-4, atol=1e-4)

    # 4) Full-width fallback (M % 128 != 0) with a forced small batch tile
    #    (nb > 1) to exercise multi-step batch pipelining.
    mod4 = GaussianFourierFeatureTransform(input_dim, mapping_size=96, scale=10,
                                           key=kb)
    x4 = jax.random.normal(kx3, (24, input_dim), dtype=jnp.float32)
    out4 = jax.block_until_ready(
        _gfft_forward(x4, mod4._B, out_dtype=np.dtype("float32"), tb=8))
    assert out4.shape == (24, 192)
    np.testing.assert_allclose(np.asarray(out4),
                               np.asarray(_reference(x4, mod4._B, False)),
                               rtol=1e-4, atol=1e-4)

    print("KERNEL_OK")
</pallas_src>

<mosaic_0001>
module attributes {stable_mosaic.version = 11 : i64} {
  func.func @_gfft_kernel_tiled(%arg0: i32, %arg1: i32, %arg2: memref<16x4xf32, #tpu.memory_space<vmem>>, %arg3: memref<4x256xf32, #tpu.memory_space<vmem>>, %arg4: memref<16x256xf32, #tpu.memory_space<vmem>>) attributes {dimension_semantics = [#tpu.dimension_semantics<parallel>, #tpu.dimension_semantics<parallel>], iteration_bounds = array<i64: 2, 1>, scalar_prefetch = 0 : i64, scratch_operands = 0 : i64, tpu.core_type = #tpu.core_type<tc>, window_params = [{transform_indices = @transform_0, window_bounds = array<i64: 16, 4>}, {transform_indices = @transform_1, window_bounds = array<i64: 4, 256>}, {transform_indices = @transform_2, window_bounds = array<i64: 16, 256>}]} {
    %c0 = arith.constant 0 : index
    %c0_0 = arith.constant 0 : index
    %0 = vector.load %arg2[%c0, %c0_0] : memref<16x4xf32, #tpu.memory_space<vmem>>, vector<16x4xf32>
    %c0_1 = arith.constant 0 : index
    %c0_2 = arith.constant 0 : index
    %1 = vector.load %arg3[%c0_1, %c0_2] : memref<4x256xf32, #tpu.memory_space<vmem>>, vector<4x256xf32>
    %cst = arith.constant dense<0.000000e+00> : vector<16x256xf32>
    %2 = tpu.matmul %0, %1, %cst {dimension_numbers = #tpu.dot_dimension_numbers<[1], [0], [0], [1], [0, 0, 1, 1], [], []>} : vector<16x4xf32>, vector<4x256xf32>, vector<16x256xf32> -> vector<16x256xf32>
    %c1_i32 = arith.constant 1 : i32
    %3 = arith.cmpi slt, %arg0, %c1_i32 : i32
    %4 = arith.extui %3 : i1 to i32
    %c0_i32 = arith.constant 0 : i32
    %5 = arith.cmpi ne, %4, %c0_i32 : i32
    scf.if %5 {
      %9 = math.sin %2 : vector<16x256xf32>
      %c0_5 = arith.constant 0 : index
      %c0_6 = arith.constant 0 : index
      %10 = vector.load %arg4[%c0_5, %c0_6] : memref<16x256xf32, #tpu.memory_space<vmem>>, vector<16x256xf32>
      tpu.vector_store %arg4[%c0_5, %c0_6], %9 {strides = array<i32>} : memref<16x256xf32, #tpu.memory_space<vmem>>, vector<16x256xf32>,
    } else {
    }
    %c1_i32_3 = arith.constant 1 : i32
    %6 = arith.cmpi sge, %arg0, %c1_i32_3 : i32
    %7 = arith.extui %6 : i1 to i32
    %c0_i32_4 = arith.constant 0 : i32
    %8 = arith.cmpi ne, %7, %c0_i32_4 : i32
    scf.if %8 {
      %9 = math.cos %2 : vector<16x256xf32>
      %c0_5 = arith.constant 0 : index
      %c0_6 = arith.constant 0 : index
      %10 = vector.load %arg4[%c0_5, %c0_6] : memref<16x256xf32, #tpu.memory_space<vmem>>, vector<16x256xf32>
      tpu.vector_store %arg4[%c0_5, %c0_6], %9 {strides = array<i32>} : memref<16x256xf32, #tpu.memory_space<vmem>>, vector<16x256xf32>,
    } else {
    }
    return
  }
  func.func @transform_0(%arg0: i32, %arg1: i32) -> (i32, i32) {
    %c0_i32 = arith.constant 0 : i32
    %c0_i32_0 = arith.constant 0 : i32
    return %arg1, %c0_i32 : i32, i32
  }
  func.func @transform_1(%arg0: i32, %arg1: i32) -> (i32, i32) {
    %c1_i32 = arith.constant 1 : i32
    %c0_i32 = arith.constant 0 : i32
    %0 = arith.cmpi eq, %c1_i32, %c0_i32 : i32
    %c1_i32_0 = arith.constant 1 : i32
    %1 = arith.select %0, %c1_i32_0, %c1_i32 : i32
    %2 = arith.remsi %arg0, %1 : i32
    %c0_i32_1 = arith.constant 0 : i32
    %3 = arith.cmpi ne, %2, %c0_i32_1 : i32
    %c0_i32_2 = arith.constant 0 : i32
    %4 = arith.cmpi slt, %2, %c0_i32_2 : i32
    %c0_i32_3 = arith.constant 0 : i32
    %5 = arith.cmpi slt, %1, %c0_i32_3 : i32
    %6 = arith.xori %4, %5 : i1
    %7 = arith.andi %6, %3 : i1
    %8 = arith.addi %2, %1 : i32
    %9 = arith.select %7, %8, %2 : i32
    %c0_i32_4 = arith.constant 0 : i32
    %c0_i32_5 = arith.constant 0 : i32
    return %c0_i32_4, %9 : i32, i32
  }
  func.func @transform_2(%arg0: i32, %arg1: i32) -> (i32, i32) {
    %c0_i32 = arith.constant 0 : i32
    return %arg1, %arg0 : i32, i32
  }
}

</mosaic_0001>

<llo_original>
// kernel: _gfft_forward.1
$region0: #{_gfft_forward.1}
  #allocation0 [shape = 'u32[]', space=smem, size = 0x4, offset = 0x4, fixed_abs, tag = 'smem constant byte address 0x4 - core index']
  #allocation1 [shape = 'u32[72,128]{1,0:T(1,128)}', space=vmem, size = 0x9000, scoped, tag = 'internal scratch']
  %s0 = inlined_call_operand.vmem [shape: f32[16,4], index: 0, kind: input, shape index: {}]
  %s1 = inlined_call_operand.vmem [shape: f32[4,256], index: 1, kind: input, shape index: {}]
  %s2 = inlined_call_operand.hbm [shape: f32[16,512], index: 2, kind: output, shape index: {}]
  %s3 = sld [smem:[#allocation0]]
  $region49: #{_gfft_forward.1} parent=0
    _
  %s5 = ssub.s32 1, %s3
  %s6 = scalar_select 0, %s5, %s3
  $region1: #{_gfft_forward.1} parent=0
    #allocation2 [shape = 'u8[32768]{0}', space=vmem, size = 0x8000, scoped, tag = 'output window, operand 0']
    #allocation3 [shape = 's32[2]{0}', space=sflag, size = 0x8, scoped, tag = 'scoped memory for _gfft_forward.1']
    %7 = vsyncpa [#allocation3], 0
    %s8 = scalar_lea.sflag [#allocation3], 1
    %9 = vsyncpa %s8, 0
    loop: start=0, step=1, limit=4
    $region2: #{_gfft_forward.1} parent=1 // loop_pre_header
      _
    $region3: #{_gfft_forward.1} parent=1 // loop_header
      %s11 = sphi 0, %s15
      %p12 = scmp.ge.s32.totalorder %s11, 4
      %s18 = sphi 0, %s30
      %s19 = sphi 0, %s26
      %s20 = sphi 0, %s18
      %s21 = sphi 0, %s19
      %s22 = sphi 0, %s20
      %s23 = sphi 0, %s21
      %s33 = sphi 0, %s35
      %s36 = sphi 0, %s33
      %s37 = sphi 0, %s36
      %s53 = sphi 0, %s37
      %s57 = sphi 0, %s57
      %s59 = sphi 0, %s57
      %s60 = sphi 0, %s59
      %s74 = sphi 0, %s60
      %s82 = sphi 0, %s84
      %s85 = sphi 0, %s82
      %s86 = sphi 0, %s85
      %s102 = sphi 0, %s86
    $region4: #{_gfft_forward.1} parent=1 // loop_header_branch
      %14 = sbr.rel (%p12) target = $region8
    $region5: #{_gfft_forward.1} parent=1 // loop_body
      %s16 = ssub.s32 %s11, 1
      %s17 = ssub.s32 %s11, 2
      %s24 = sadd.s32 1, %s19
      %p25 = scmp.ge.s32.totalorder %s24, 1
      %s26 = scalar_select %p25, 0, %s24
      %s27 = sadd.s32 1, %s18
      %s28 = scalar_select %p25, %s27, %s18
      %p29 = scmp.ge.s32.totalorder %s28, 2
      %s30 = scalar_select %p29, 0, %s28
      %s31 = ssub.s32 %s19, %s26
      %p32 = scmp.eq.s32.totalorder %s31, 0
      %s34 = sadd.s32 %s33, 1
      %s35 = scalar_select %p32, %s33, %s34
      %p38 = pneg %p32
      %p39 = scmp.eq.s32.totalorder %s11, 1
      %p40 = por %p38, %p39
      %p41 = scmp.ne.s32.totalorder %s33, %s36
      %p42 = scmp.eq.s32.totalorder %s11, 0
      %p43 = por %p41, %p42
      %p44 = scmp.ne.s32.totalorder %s33, %s36
      %p45 = scmp.eq.s32.totalorder %s16, 1
      %p46 = por %p44, %p45
      %p47 = scmp.ne.s32.totalorder %s36, %s37
      %p48 = scmp.eq.s32.totalorder %s16, 0
      %p49 = por %p47, %p48
      %p50 = scmp.ne.s32.totalorder %s36, %s37
      %p51 = scmp.eq.s32.totalorder %s17, 1
      %p52 = por %p50, %p51
      %p54 = scmp.ne.s32.totalorder %s37, %s53
      %p55 = scmp.eq.s32.totalorder %s17, 0
      %p56 = por %p54, %p55
      %s58 = sadd.s32 %s57, 1
      %p61 = scmp.eq.s32.totalorder %s11, 1
      %p62 = scmp.ne.s32.totalorder %s57, %s59
      %p63 = scmp.eq.s32.totalorder %s11, 0
      %p64 = por %p62, %p63
      %p65 = scmp.ne.s32.totalorder %s57, %s59
      %p66 = scmp.eq.s32.totalorder %s16, 1
      %p67 = por %p65, %p66
      %p68 = scmp.ne.s32.totalorder %s59, %s60
      %p69 = scmp.eq.s32.totalorder %s16, 0
      %p70 = por %p68, %p69
      %p71 = scmp.ne.s32.totalorder %s59, %s60
      %p72 = scmp.eq.s32.totalorder %s17, 1
      %p73 = por %p71, %p72
      %p75 = scmp.ne.s32.totalorder %s60, %s74
      %p76 = scmp.eq.s32.totalorder %s17, 0
      %p77 = por %p75, %p76
      %s78 = ssub.s32 %s19, %s26
      %s79 = ssub.s32 %s18, %s30
      %s80 = sor.u32 %s78, %s79
      %p81 = scmp.eq.s32.totalorder %s80, 0
      %s83 = sadd.s32 %s82, 1
      %s84 = scalar_select %p81, %s82, %s83
      %p87 = pneg %p81
      %p88 = scmp.eq.s32.totalorder %s11, 1
      %p89 = por %p87, %p88
      %p90 = scmp.ne.s32.totalorder %s82, %s85
      %p91 = scmp.eq.s32.totalorder %s11, 0
      %p92 = por %p90, %p91
      %p93 = scmp.ne.s32.totalorder %s82, %s85
      %p94 = scmp.eq.s32.totalorder %s16, 1
      %p95 = por %p93, %p94
      %p96 = scmp.ne.s32.totalorder %s85, %s86
      %p97 = scmp.eq.s32.totalorder %s16, 0
      %p98 = por %p96, %p97
      %p99 = scmp.ne.s32.totalorder %s85, %s86
      %p100 = scmp.eq.s32.totalorder %s17, 1
      %p101 = por %p99, %p100
      %p103 = scmp.ne.s32.totalorder %s86, %s102
      %p104 = scmp.eq.s32.totalorder %s17, 0
      %p105 = por %p103, %p104
      %p106 = scmp.le.s32.totalorder 1, %s11
      %p107 = scmp.lt.s32.totalorder %s11, 3
      %p108 = pnand %p106, %p107
      %p109 = pneg %p108
      // Predicated region
      $region9: #{_gfft_forward.1} parent=5 // pred_check
        _
      $region10: #{_gfft_forward.1} parent=5 // pred_check_branch
        %111 = sbr.rel (%p108) target = $region12
      $region11: #{_gfft_forward.1} parent=5 // pred_region
        %s112 = ssub.s32 %s11, 1
        // Predicated region
        $region13: #{_gfft_forward.1} parent=11 // pred_check
          %p113 = pneg %p49
        $region14: #{_gfft_forward.1} parent=11 // pred_check_branch
          %115 = sbr.rel (%p113) target = $region16
        $region15: #{_gfft_forward.1} parent=11 // pred_region
          %s116 = smul.u32 2, %s21
          %p117 = scmp.lt.s32.totalorder %s116, 1
          %s118 = scalar_select %p117, %s116, 1
          %s119 = smul.addr %s118, 8
          %s120 = scalar_lea.vmem %s0, %s119
          %s121 = smul.u32 2, %s21
        $region16: #{_gfft_forward.1} parent=11 // pred_fallthru
          _
        // Predicated region
        $region17: #{_gfft_forward.1} parent=11 // pred_check
          %p122 = pneg %p70
        $region18: #{_gfft_forward.1} parent=11 // pred_check_branch
          %124 = sbr.rel (%p122) target = $region20
        $region19: #{_gfft_forward.1} parent=11 // pred_region
          _
        $region20: #{_gfft_forward.1} parent=11 // pred_fallthru
          _
      $region12: #{_gfft_forward.1} parent=5 // pred_fallthru
        _
      %p125 = scmp.lt.s32.totalorder %s11, 2
      // Predicated region
      $region21: #{_gfft_forward.1} parent=5 // pred_check
        %p126 = pneg %p125
      $region22: #{_gfft_forward.1} parent=5 // pred_check_branch
        %128 = sbr.rel (%p126) target = $region24
      $region23: #{_gfft_forward.1} parent=5 // pred_region
        _
      $region24: #{_gfft_forward.1} parent=5 // pred_fallthru
        _
      %p129 = scmp.le.s32.totalorder 1, %s11
      %p130 = scmp.lt.s32.totalorder %s11, 3
      %p131 = pnand %p129, %p130
      %p132 = pneg %p131
      // Predicated region
      $region25: #{_gfft_forward.1} parent=5 // pred_check
        _
      $region26: #{_gfft_forward.1} parent=5 // pred_check_branch
        %134 = sbr.rel (%p131) target = $region28
      $region27: #{_gfft_forward.1} parent=5 // pred_region
        %s135 = ssub.s32 %s11, 1
        %s136 = smul.u32 2, %s21
        %p137 = scmp.lt.s32.totalorder %s136, 1
        %s138 = scalar_select %p137, %s136, 1
        %s139 = smul.addr %s138, 8
        %s140 = scalar_lea.vmem %s0, %s139
        %p141 = pneg %p49
        %p142 = pneg %p46
        %p143 = pneg %p70
        %p144 = pneg %p67
        %p145 = pneg %p98
        %p146 = pneg %p95
        %s147 = sand.u32 %s85, 1
        %s148 = scalar_lea.sflag [#allocation3], %s147
        %s149 = sand.u32 %s85, 1
        %s150 = smul.addr %s149, 32
        %s151 = scalar_lea.vmem [#allocation2], %s150
        %s152 = smul.u32 2, %s21
        %p153 = scmp.lt.s32.totalorder %s152, 1
        %s154 = scalar_select %p153, %s152, 1
        %s155 = smul.addr %s154, 8
        %s156 = scalar_lea.vmem %s0, %s155
        %s157 = smul.u32 2, %s21
        %s158 = smul.u32 2, %s21
        %s159 = smul.u32 2, %s20
        %v160 = vld [vmem:[%s156] sm:$0xff]
        %v161 = vld [vmem:[%s156 + $0x8] sm:$0xff]
        %v162 = vld [vmem:[%s1] sm:$0xff]
        %164 = vst [vmem:[#allocation1] ss:$2 sm:$0xff] %v162
        %v165 = vld.sshfl [vmem:[#allocation1] sm:$0xff pattern:$0x75316420]
        %v166 = vld.sshfl [vmem:[#allocation1 + $0x8] sm:$0xff pattern:$0x75316420]
        %vm167 = vcmask 31744
        %v169 = vsel %vm167, %v160, 0
        %v172 = vsel %vm167, %v161, 0
        %vm174 = vcmask 1043456
        %v175 = vsel %vm174, %v165, 0
        %v177 = vsel %vm174, %v166, 0
        %179 = vmatpush.msra.mxu0 0.0
        %180 = vmatpush.msra.mxu0 0.0
        %181 = vmatpush.msra.mxu0 0.0
        %182 = vmatpush.msra.mxu0 0.0
        %183 = vmatpush.msra.mxu0 0.0
        %184 = vmatpush.msra.mxu0 0.0
        %185 = vmatpush.msra.mxu0 0.0
        %186 = vmatpush.msra.mxu0 0.0
        %187 = vmatpush.msra.mxu0 0.0
        %188 = vmatpush.msra.mxu0 0.0
        %189 = vmatpush.msra.mxu0 0.0
        %190 = vmatpush.msra.mxu0 0.0
        %191 = vmatpush.msra.mxu0 0.0
        %192 = vmatpush.msra.mxu0 0.0
        %193 = vmatpush.msra.mxu0 0.0
        %194 = vmatpush.msra.mxu0 %v175
        %195 = vmatmul.f32.gmra.mxu0 %v169
        %v196 = vpop.f32.mrf.mxu0
        %v197 = vadd.f32 0.0, %v196
        %198 = vmatmul.f32.gmra.mxu0 %v172
        %v199 = vpop.f32.mrf.mxu0
        %v200 = vadd.f32 0.0, %v199
        %201 = vdwg.mxu0
        %202 = vmatpush.msra.mxu0 0.0
        %203 = vmatpush.msra.mxu0 0.0
        %204 = vmatpush.msra.mxu0 0.0
        %205 = vmatpush.msra.mxu0 0.0
        %206 = vmatpush.msra.mxu0 0.0
        %207 = vmatpush.msra.mxu0 0.0
        %208 = vmatpush.msra.mxu0 0.0
        %209 = vmatpush.msra.mxu0 0.0
        %210 = vmatpush.msra.mxu0 0.0
        %211 = vmatpush.msra.mxu0 0.0
        %212 = vmatpush.msra.mxu0 0.0
        %213 = vmatpush.msra.mxu0 0.0
        %214 = vmatpush.msra.mxu0 0.0
        %215 = vmatpush.msra.mxu0 0.0
        %216 = vmatpush.msra.mxu0 0.0
        %217 = vmatpush.msra.mxu0 %v177
        %218 = vmatmul.f32.gmra.mxu0 %v169
        %v219 = vpop.f32.mrf.mxu0
        %v220 = vadd.f32 0.0, %v219
        %221 = vmatmul.f32.gmra.mxu0 %v172
        %v222 = vpop.f32.mrf.mxu0
        %v223 = vadd.f32 0.0, %v222
        %224 = vdwg.mxu0
        %p225 = scmp.lt.s32.totalorder %s20, 1
        // Predicated region
        $region29: #{_gfft_forward.1} parent=27 // pred_check
          %p226 = pneg %p225
        $region30: #{_gfft_forward.1} parent=27 // pred_check_branch
          %228 = sbr.rel (%p226) target = $region32
        $region31: #{_gfft_forward.1} parent=27 // pred_region
          %v229 = vand.u32 2147483647, %v197
          %vm230 = vcmp.le.f32.partialorder %v229, 0.7853982
          %vm231 = vcmp.lt.s32.totalorder %v197, 0
          %v232 = vand.u32 %v197, 2139095040
          %v233 = vshrl.u32 %v232, 23
          %v234 = vsub.s32 %v233, 127
          %v235 = vand.u32 2147483647, %v197
          %v236 = vand.u32 %v235, 8388607
          %v237 = vor.u32 %v236, 8388608
          %v238 = vsub.s32 0, %v237
          %v239 = vadd.s32 %v234, 1
          %vm240 = vcmp.gt.s32.totalorder %v239, 0
          %v241 = vsel %vm240, %v239, 0
          %v242 = vshrl.u32 %v241, 5
          %v243 = vand.u32 %v241, 31
          %v244 = vsub.s32 32, %v243
          %v245 = vshrl.u32 683565275, %v244
          %v246 = vshll.u32 683565275, %v243
          %v247 = vshrl.u32 2475754826, %v244
          %v248 = vor.u32 %v246, %v247
          %v249 = vshll.u32 2475754826, %v243
          %v250 = vshrl.u32 2131351028, %v244
          %v251 = vor.u32 %v249, %v250
          %v252 = vshll.u32 2131351028, %v243
          %v253 = vshrl.u32 2102212464, %v244
          %v254 = vor.u32 %v252, %v253
          %v255 = vshll.u32 2102212464, %v243
          %v256 = vshrl.u32 920167782, %v244
          %v257 = vor.u32 %v255, %v256
          %v258 = vshll.u32 920167782, %v243
          %v259 = vshrl.u32 1326507024, %v244
          %v260 = vor.u32 %v258, %v259
          %vm261 = vcmp.lt.s32.totalorder %v242, 1
          %vm262 = vcmp.lt.s32.totalorder %v242, 2
          %vm263 = vcmp.lt.s32.totalorder %v242, 3
          %vm264 = vcmp.lt.s32.totalorder %v242, 4
          %v265 = vsel %vm261, %v245, %v248
          %v266 = vsel %vm264, %v254, 2102212464
          %v267 = vsel %vm263, %v251, %v266
          %v268 = vsel %vm262, %v265, %v267
          %v269 = vsel %vm261, %v248, %v251
          %v270 = vsel %vm264, %v257, 920167782
          %v271 = vsel %vm263, %v254, %v270
          %v272 = vsel %vm262, %v269, %v271
          %v273 = vsel %vm261, %v251, %v254
          %v274 = vsel %vm264, %v260, 1326507024
          %v275 = vsel %vm263, %v257, %v274
          %v276 = vsel %vm262, %v273, %v275
          %v277 = vshll.u32 %v237, 8
          %v278 = vand.u32 %v277, 65535
          %v279 = vshrl.u32 %v277, 16
          %v280 = vand.u32 %v276, 65535
          %v281 = vshrl.u32 %v276, 16
          %v282 = vmul.u32 %v278, %v280
          %v283 = vmul.u32 %v278, %v281
          %v284 = vmul.u32 %v279, %v280
          %v285 = vmul.u32 %v279, %v281
          %v286 = vshll.u32 %v283, 16
          %v287 = vshrl.u32 %v283, 16
          %v288 = vshll.u32 %v284, 16
          %v289 = vshrl.u32 %v284, 16
          %vm290 = vc.u32 %v282, %v286
          %v291 = vsel %vm290, 1, 0
          %v292 = vadd.s32 %v282, %v286
          %v293 = vadd.s32 %v285, %v291
          %vm294 = vc.u32 %v292, %v288
          %v295 = vsel %vm294, 1, 0
          %v296 = vadd.s32 %v292, %v288
          %v297 = vadd.s32 %v293, %v295
          %v298 = vadd.s32 %v297, %v287
          %v299 = vadd.s32 %v298, %v289
          %v300 = vand.u32 %v277, 65535
          %v301 = vshrl.u32 %v277, 16
          %v302 = vand.u32 %v272, 65535
          %v303 = vshrl.u32 %v272, 16
          %v304 = vmul.u32 %v300, %v302
          %v305 = vmul.u32 %v300, %v303
          %v306 = vmul.u32 %v301, %v302
          %v307 = vmul.u32 %v301, %v303
          %v308 = vshll.u32 %v305, 16
          %v309 = vshrl.u32 %v305, 16
          %v310 = vshll.u32 %v306, 16
          %v311 = vshrl.u32 %v306, 16
          %vm312 = vc.u32 %v304, %v308
          %v313 = vsel %vm312, 1, 0
          %v314 = vadd.s32 %v304, %v308
          %v315 = vadd.s32 %v307, %v313
          %vm316 = vc.u32 %v314, %v310
          %v317 = vsel %vm316, 1, 0
          %v318 = vadd.s32 %v314, %v310
          %v319 = vadd.s32 %v315, %v317
          %v320 = vadd.s32 %v319, %v309
          %v321 = vadd.s32 %v320, %v311
          %v322 = vmul.u32 %v277, %v268
          %v323 = vadd.s32 %v299, %v318
          %vm324 = vc.u32 %v299, %v318
          %v325 = vadd.s32 %v321, 1
          %v326 = vsel %vm324, %v325, %v321
          %v327 = vadd.s32 %v322, %v326
          %v328 = vadd.s32 %v327, 536870912
          %v329 = vshrl.u32 %v328, 30
          %v330 = vshll.u32 %v329, 30
          %v331 = vsub.s32 %v327, %v330
          %vm332 = vcmp.lt.s32.totalorder %v331, 0
          %v333 = vsub.s32 0, %v331
          %v334 = vsel %vm332, %v333, %v331
          %v335 = vclz %v334
          %v336 = vsub.s32 %v335, 2
          %vm337 = vcmp.gt.s32.totalorder 0, %v336
          %v338 = vsel %vm337, 0, %v336
          %v339 = vsub.s32 32, %v338
          %v340 = vshll.u32 %v331, %v338
          %v341 = vshrl.u32 %v323, %v339
          %v342 = vor.u32 %v340, %v341
          %v343 = vsub.s32 4294967266, %v338
          %v344 = vadd.s32 %v343, 127
          %v345 = vshll.u32 %v344, 23
          %v346 = vor.u32 4788187, %v345
          %v347 = vand.u32 2147483647, %v346
          %v349 = vcvt.s32.f32 %v342
          %v350 = vmul.f32 %v349, %v347
          %v351 = vxor.u32 %v350, 2147483648
          %v352 = vsel %vm231, %v351, %v350
          %v353 = vsub.s32 4, %v329
          %v354 = vsel %vm231, %v353, %v329
          %v355 = vsel %vm230, %v197, %v352
          %v356 = vsel %vm230, 0, %v354
          %v357 = vmul.f32 %v355, %v355
          %v358 = vmul.f32 %v357, -0.001358992
          %v359 = vadd.f32 %v358, 0.041655596
          %v360 = vmul.f32 %v357, %v359
          %v361 = vadd.f32 %v360, -0.4999988
          %v362 = vmul.f32 %v357, %v361
          %v363 = vadd.f32 1.0, %v362
          %v364 = vmul.f32 %v355, %v355
          %v365 = vmul.f32 %v364, -0.00019511016
          %v366 = vadd.f32 %v365, 0.008332121
          %v367 = vmul.f32 %v364, %v366
          %v368 = vadd.f32 %v367, -0.16666654
          %v369 = vmul.f32 %v364, %v368
          %v370 = vadd.f32 %v369, 1.0
          %v371 = vmul.f32 %v370, %v355
          %vm372 = vweird.f32 %v197
          %v373 = vadd.s32 %v356, 3
          %v374 = vand.u32 %v373, 3
          %vm375 = vcmp.lt.s32.totalorder %v374, 2
          %vm376 = vcmp.eq.s32.totalorder %v374, 0
          %v377 = vxor.u32 %v371, 2147483648
          %v378 = vsel %vm376, %v363, %v377
          %vm379 = vcmp.eq.s32.totalorder %v374, 2
          %v380 = vxor.u32 %v363, 2147483648
          %v381 = vsel %vm379, %v380, %v371
          %v382 = vsel %vm375, %v378, %v381
          %v383 = vsel %vm372, nan, %v382
          %v384 = vand.u32 2147483647, %v220
          %vm385 = vcmp.le.f32.partialorder %v384, 0.7853982
          %vm386 = vcmp.lt.s32.totalorder %v220, 0
          %v387 = vand.u32 %v220, 2139095040
          %v388 = vshrl.u32 %v387, 23
          %v389 = vsub.s32 %v388, 127
          %v390 = vand.u32 2147483647, %v220
          %v391 = vand.u32 %v390, 8388607
          %v392 = vor.u32 %v391, 8388608
          %v393 = vsub.s32 0, %v392
          %v394 = vadd.s32 %v389, 1
          %vm395 = vcmp.gt.s32.totalorder %v394, 0
          %v396 = vsel %vm395, %v394, 0
          %v397 = vshrl.u32 %v396, 5
          %v398 = vand.u32 %v396, 31
          %v399 = vsub.s32 32, %v398
          %v400 = vshrl.u32 683565275, %v399
          %v401 = vshll.u32 683565275, %v398
          %v402 = vshrl.u32 2475754826, %v399
          %v403 = vor.u32 %v401, %v402
          %v404 = vshll.u32 2475754826, %v398
          %v405 = vshrl.u32 2131351028, %v399
          %v406 = vor.u32 %v404, %v405
          %v407 = vshll.u32 2131351028, %v398
          %v408 = vshrl.u32 2102212464, %v399
          %v409 = vor.u32 %v407, %v408
          %v410 = vshll.u32 2102212464, %v398
          %v411 = vshrl.u32 920167782, %v399
          %v412 = vor.u32 %v410, %v411
          %v413 = vshll.u32 920167782, %v398
          %v414 = vshrl.u32 1326507024, %v399
          %v415 = vor.u32 %v413, %v414
          %vm416 = vcmp.lt.s32.totalorder %v397, 1
          %vm417 = vcmp.lt.s32.totalorder %v397, 2
          %vm418 = vcmp.lt.s32.totalorder %v397, 3
          %vm419 = vcmp.lt.s32.totalorder %v397, 4
          %v420 = vsel %vm416, %v400, %v403
          %v421 = vsel %vm419, %v409, 2102212464
          %v422 = vsel %vm418, %v406, %v421
          %v423 = vsel %vm417, %v420, %v422
          %v424 = vsel %vm416, %v403, %v406
          %v425 = vsel %vm419, %v412, 920167782
          %v426 = vsel %vm418, %v409, %v425
          %v427 = vsel %vm417, %v424, %v426
          %v428 = vsel %vm416, %v406, %v409
          %v429 = vsel %vm419, %v415, 1326507024
          %v430 = vsel %vm418, %v412, %v429
          %v431 = vsel %vm417, %v428, %v430
          %v432 = vshll.u32 %v392, 8
          %v433 = vand.u32 %v432, 65535
          %v434 = vshrl.u32 %v432, 16
          %v435 = vand.u32 %v431, 65535
          %v436 = vshrl.u32 %v431, 16
          %v437 = vmul.u32 %v433, %v435
          %v438 = vmul.u32 %v433, %v436
          %v439 = vmul.u32 %v434, %v435
          %v440 = vmul.u32 %v434, %v436
          %v441 = vshll.u32 %v438, 16
          %v442 = vshrl.u32 %v438, 16
          %v443 = vshll.u32 %v439, 16
          %v444 = vshrl.u32 %v439, 16
          %vm445 = vc.u32 %v437, %v441
          %v446 = vsel %vm445, 1, 0
          %v447 = vadd.s32 %v437, %v441
          %v448 = vadd.s32 %v440, %v446
          %vm449 = vc.u32 %v447, %v443
          %v450 = vsel %vm449, 1, 0
          %v451 = vadd.s32 %v447, %v443
          %v452 = vadd.s32 %v448, %v450
          %v453 = vadd.s32 %v452, %v442
          %v454 = vadd.s32 %v453, %v444
          %v455 = vand.u32 %v432, 65535
          %v456 = vshrl.u32 %v432, 16
          %v457 = vand.u32 %v427, 65535
          %v458 = vshrl.u32 %v427, 16
          %v459 = vmul.u32 %v455, %v457
          %v460 = vmul.u32 %v455, %v458
          %v461 = vmul.u32 %v456, %v457
          %v462 = vmul.u32 %v456, %v458
          %v463 = vshll.u32 %v460, 16
          %v464 = vshrl.u32 %v460, 16
          %v465 = vshll.u32 %v461, 16
          %v466 = vshrl.u32 %v461, 16
          %vm467 = vc.u32 %v459, %v463
          %v468 = vsel %vm467, 1, 0
          %v469 = vadd.s32 %v459, %v463
          %v470 = vadd.s32 %v462, %v468
          %vm471 = vc.u32 %v469, %v465
          %v472 = vsel %vm471, 1, 0
          %v473 = vadd.s32 %v469, %v465
          %v474 = vadd.s32 %v470, %v472
          %v475 = vadd.s32 %v474, %v464
          %v476 = vadd.s32 %v475, %v466
          %v477 = vmul.u32 %v432, %v423
          %v478 = vadd.s32 %v454, %v473
          %vm479 = vc.u32 %v454, %v473
          %v480 = vadd.s32 %v476, 1
          %v481 = vsel %vm479, %v480, %v476
          %v482 = vadd.s32 %v477, %v481
          %v483 = vadd.s32 %v482, 536870912
          %v484 = vshrl.u32 %v483, 30
          %v485 = vshll.u32 %v484, 30
          %v486 = vsub.s32 %v482, %v485
          %vm487 = vcmp.lt.s32.totalorder %v486, 0
          %v488 = vsub.s32 0, %v486
          %v489 = vsel %vm487, %v488, %v486
          %v490 = vclz %v489
          %v491 = vsub.s32 %v490, 2
          %vm492 = vcmp.gt.s32.totalorder 0, %v491
          %v493 = vsel %vm492, 0, %v491
          %v494 = vsub.s32 32, %v493
          %v495 = vshll.u32 %v486, %v493
          %v496 = vshrl.u32 %v478, %v494
          %v497 = vor.u32 %v495, %v496
          %v498 = vsub.s32 4294967266, %v493
          %v499 = vadd.s32 %v498, 127
          %v500 = vshll.u32 %v499, 23
          %v501 = vor.u32 4788187, %v500
          %v502 = vand.u32 2147483647, %v501
          %v504 = vcvt.s32.f32 %v497
          %v505 = vmul.f32 %v504, %v502
          %v506 = vxor.u32 %v505, 2147483648
          %v507 = vsel %vm386, %v506, %v505
          %v508 = vsub.s32 4, %v484
          %v509 = vsel %vm386, %v508, %v484
          %v510 = vsel %vm385, %v220, %v507
          %v511 = vsel %vm385, 0, %v509
          %v512 = vmul.f32 %v510, %v510
          %v513 = vmul.f32 %v512, -0.001358992
          %v514 = vadd.f32 %v513, 0.041655596
          %v515 = vmul.f32 %v512, %v514
          %v516 = vadd.f32 %v515, -0.4999988
          %v517 = vmul.f32 %v512, %v516
          %v518 = vadd.f32 1.0, %v517
          %v519 = vmul.f32 %v510, %v510
          %v520 = vmul.f32 %v519, -0.00019511016
          %v521 = vadd.f32 %v520, 0.008332121
          %v522 = vmul.f32 %v519, %v521
          %v523 = vadd.f32 %v522, -0.16666654
          %v524 = vmul.f32 %v519, %v523
          %v525 = vadd.f32 %v524, 1.0
          %v526 = vmul.f32 %v525, %v510
          %vm527 = vweird.f32 %v220
          %v528 = vadd.s32 %v511, 3
          %v529 = vand.u32 %v528, 3
          %vm530 = vcmp.lt.s32.totalorder %v529, 2
          %vm531 = vcmp.eq.s32.totalorder %v529, 0
          %v532 = vxor.u32 %v526, 2147483648
          %v533 = vsel %vm531, %v518, %v532
          %vm534 = vcmp.eq.s32.totalorder %v529, 2
          %v535 = vxor.u32 %v518, 2147483648
          %v536 = vsel %vm534, %v535, %v526
          %v537 = vsel %vm530, %v533, %v536
          %v538 = vsel %vm527, nan, %v537
          %v539 = vand.u32 2147483647, %v200
          %vm540 = vcmp.le.f32.partialorder %v539, 0.7853982
          %vm541 = vcmp.lt.s32.totalorder %v200, 0
          %v542 = vand.u32 %v200, 2139095040
          %v543 = vshrl.u32 %v542, 23
          %v544 = vsub.s32 %v543, 127
          %v545 = vand.u32 2147483647, %v200
          %v546 = vand.u32 %v545, 8388607
          %v547 = vor.u32 %v546, 8388608
          %v548 = vsub.s32 0, %v547
          %v549 = vadd.s32 %v544, 1
          %vm550 = vcmp.gt.s32.totalorder %v549, 0
          %v551 = vsel %vm550, %v549, 0
          %v552 = vshrl.u32 %v551, 5
          %v553 = vand.u32 %v551, 31
          %v554 = vsub.s32 32, %v553
          %v555 = vshrl.u32 683565275, %v554
          %v556 = vshll.u32 683565275, %v553
          %v557 = vshrl.u32 2475754826, %v554
          %v558 = vor.u32 %v556, %v557
          %v559 = vshll.u32 2475754826, %v553
          %v560 = vshrl.u32 2131351028, %v554
          %v561 = vor.u32 %v559, %v560
          %v562 = vshll.u32 2131351028, %v553
          %v563 = vshrl.u32 2102212464, %v554
          %v564 = vor.u32 %v562, %v563
          %v565 = vshll.u32 2102212464, %v553
          %v566 = vshrl.u32 920167782, %v554
          %v567 = vor.u32 %v565, %v566
          %v568 = vshll.u32 920167782, %v553
          %v569 = vshrl.u32 1326507024, %v554
          %v570 = vor.u32 %v568, %v569
          %vm571 = vcmp.lt.s32.totalorder %v552, 1
          %vm572 = vcmp.lt.s32.totalorder %v552, 2
          %vm573 = vcmp.lt.s32.totalorder %v552, 3
          %vm574 = vcmp.lt.s32.totalorder %v552, 4
          %v575 = vsel %vm571, %v555, %v558
          %v576 = vsel %vm574, %v564, 2102212464
          %v577 = vsel %vm573, %v561, %v576
          %v578 = vsel %vm572, %v575, %v577
          %v579 = vsel %vm571, %v558, %v561
          %v580 = vsel %vm574, %v567, 920167782
          %v581 = vsel %vm573, %v564, %v580
          %v582 = vsel %vm572, %v579, %v581
          %v583 = vsel %vm571, %v561, %v564
          %v584 = vsel %vm574, %v570, 1326507024
          %v585 = vsel %vm573, %v567, %v584
          %v586 = vsel %vm572, %v583, %v585
          %v587 = vshll.u32 %v547, 8
          %v588 = vand.u32 %v587, 65535
          %v589 = vshrl.u32 %v587, 16
          %v590 = vand.u32 %v586, 65535
          %v591 = vshrl.u32 %v586, 16
          %v592 = vmul.u32 %v588, %v590
          %v593 = vmul.u32 %v588, %v591
          %v594 = vmul.u32 %v589, %v590
          %v595 = vmul.u32 %v589, %v591
          %v596 = vshll.u32 %v593, 16
          %v597 = vshrl.u32 %v593, 16
          %v598 = vshll.u32 %v594, 16
          %v599 = vshrl.u32 %v594, 16
          %vm600 = vc.u32 %v592, %v596
          %v601 = vsel %vm600, 1, 0
          %v602 = vadd.s32 %v592, %v596
          %v603 = vadd.s32 %v595, %v601
          %vm604 = vc.u32 %v602, %v598
          %v605 = vsel %vm604, 1, 0
          %v606 = vadd.s32 %v602, %v598
          %v607 = vadd.s32 %v603, %v605
          %v608 = vadd.s32 %v607, %v597
          %v609 = vadd.s32 %v608, %v599
          %v610 = vand.u32 %v587, 65535
          %v611 = vshrl.u32 %v587, 16
          %v612 = vand.u32 %v582, 65535
          %v613 = vshrl.u32 %v582, 16
          %v614 = vmul.u32 %v610, %v612
          %v615 = vmul.u32 %v610, %v613
          %v616 = vmul.u32 %v611, %v612
          %v617 = vmul.u32 %v611, %v613
          %v618 = vshll.u32 %v615, 16
          %v619 = vshrl.u32 %v615, 16
          %v620 = vshll.u32 %v616, 16
          %v621 = vshrl.u32 %v616, 16
          %vm622 = vc.u32 %v614, %v618
          %v623 = vsel %vm622, 1, 0
          %v624 = vadd.s32 %v614, %v618
          %v625 = vadd.s32 %v617, %v623
          %vm626 = vc.u32 %v624, %v620
          %v627 = vsel %vm626, 1, 0
          %v628 = vadd.s32 %v624, %v620
          %v629 = vadd.s32 %v625, %v627
          %v630 = vadd.s32 %v629, %v619
          %v631 = vadd.s32 %v630, %v621
          %v632 = vmul.u32 %v587, %v578
          %v633 = vadd.s32 %v609, %v628
          %vm634 = vc.u32 %v609, %v628
          %v635 = vadd.s32 %v631, 1
          %v636 = vsel %vm634, %v635, %v631
          %v637 = vadd.s32 %v632, %v636
          %v638 = vadd.s32 %v637, 536870912
          %v639 = vshrl.u32 %v638, 30
          %v640 = vshll.u32 %v639, 30
          %v641 = vsub.s32 %v637, %v640
          %vm642 = vcmp.lt.s32.totalorder %v641, 0
          %v643 = vsub.s32 0, %v641
          %v644 = vsel %vm642, %v643, %v641
          %v645 = vclz %v644
          %v646 = vsub.s32 %v645, 2
          %vm647 = vcmp.gt.s32.totalorder 0, %v646
          %v648 = vsel %vm647, 0, %v646
          %v649 = vsub.s32 32, %v648
          %v650 = vshll.u32 %v641, %v648
          %v651 = vshrl.u32 %v633, %v649
          %v652 = vor.u32 %v650, %v651
          %v653 = vsub.s32 4294967266, %v648
          %v654 = vadd.s32 %v653, 127
          %v655 = vshll.u32 %v654, 23
          %v656 = vor.u32 4788187, %v655
          %v657 = vand.u32 2147483647, %v656
          %v659 = vcvt.s32.f32 %v652
          %v660 = vmul.f32 %v659, %v657
          %v661 = vxor.u32 %v660, 2147483648
          %v662 = vsel %vm541, %v661, %v660
          %v663 = vsub.s32 4, %v639
          %v664 = vsel %vm541, %v663, %v639
          %v665 = vsel %vm540, %v200, %v662
          %v666 = vsel %vm540, 0, %v664
          %v667 = vmul.f32 %v665, %v665
          %v668 = vmul.f32 %v667, -0.001358992
          %v669 = vadd.f32 %v668, 0.041655596
          %v670 = vmul.f32 %v667, %v669
          %v671 = vadd.f32 %v670, -0.4999988
          %v672 = vmul.f32 %v667, %v671
          %v673 = vadd.f32 1.0, %v672
          %v674 = vmul.f32 %v665, %v665
          %v675 = vmul.f32 %v674, -0.00019511016
          %v676 = vadd.f32 %v675, 0.008332121
          %v677 = vmul.f32 %v674, %v676
          %v678 = vadd.f32 %v677, -0.16666654
          %v679 = vmul.f32 %v674, %v678
          %v680 = vadd.f32 %v679, 1.0
          %v681 = vmul.f32 %v680, %v665
          %vm682 = vweird.f32 %v200
          %v683 = vadd.s32 %v666, 3
          %v684 = vand.u32 %v683, 3
          %vm685 = vcmp.lt.s32.totalorder %v684, 2
          %vm686 = vcmp.eq.s32.totalorder %v684, 0
          %v687 = vxor.u32 %v681, 2147483648
          %v688 = vsel %vm686, %v673, %v687
          %vm689 = vcmp.eq.s32.totalorder %v684, 2
          %v690 = vxor.u32 %v673, 2147483648
          %v691 = vsel %vm689, %v690, %v681
          %v692 = vsel %vm685, %v688, %v691
          %v693 = vsel %vm682, nan, %v692
          %v694 = vand.u32 2147483647, %v223
          %vm695 = vcmp.le.f32.partialorder %v694, 0.7853982
          %vm696 = vcmp.lt.s32.totalorder %v223, 0
          %v697 = vand.u32 %v223, 2139095040
          %v698 = vshrl.u32 %v697, 23
          %v699 = vsub.s32 %v698, 127
          %v700 = vand.u32 2147483647, %v223
          %v701 = vand.u32 %v700, 8388607
          %v702 = vor.u32 %v701, 8388608
          %v703 = vsub.s32 0, %v702
          %v704 = vadd.s32 %v699, 1
          %vm705 = vcmp.gt.s32.totalorder %v704, 0
          %v706 = vsel %vm705, %v704, 0
          %v707 = vshrl.u32 %v706, 5
          %v708 = vand.u32 %v706, 31
          %v709 = vsub.s32 32, %v708
          %v710 = vshrl.u32 683565275, %v709
          %v711 = vshll.u32 683565275, %v708
          %v712 = vshrl.u32 2475754826, %v709
          %v713 = vor.u32 %v711, %v712
          %v714 = vshll.u32 2475754826, %v708
          %v715 = vshrl.u32 2131351028, %v709
          %v716 = vor.u32 %v714, %v715
          %v717 = vshll.u32 2131351028, %v708
          %v718 = vshrl.u32 2102212464, %v709
          %v719 = vor.u32 %v717, %v718
          %v720 = vshll.u32 2102212464, %v708
          %v721 = vshrl.u32 920167782, %v709
          %v722 = vor.u32 %v720, %v721
          %v723 = vshll.u32 920167782, %v708
          %v724 = vshrl.u32 1326507024, %v709
          %v725 = vor.u32 %v723, %v724
          %vm726 = vcmp.lt.s32.totalorder %v707, 1
          %vm727 = vcmp.lt.s32.totalorder %v707, 2
          %vm728 = vcmp.lt.s32.totalorder %v707, 3
          %vm729 = vcmp.lt.s32.totalorder %v707, 4
          %v730 = vsel %vm726, %v710, %v713
          %v731 = vsel %vm729, %v719, 2102212464
          %v732 = vsel %vm728, %v716, %v731
          %v733 = vsel %vm727, %v730, %v732
          %v734 = vsel %vm726, %v713, %v716
          %v735 = vsel %vm729, %v722, 920167782
          %v736 = vsel %vm728, %v719, %v735
          %v737 = vsel %vm727, %v734, %v736
          %v738 = vsel %vm726, %v716, %v719
          %v739 = vsel %vm729, %v725, 1326507024
          %v740 = vsel %vm728, %v722, %v739
          %v741 = vsel %vm727, %v738, %v740
          %v742 = vshll.u32 %v702, 8
          %v743 = vand.u32 %v742, 65535
          %v744 = vshrl.u32 %v742, 16
          %v745 = vand.u32 %v741, 65535
          %v746 = vshrl.u32 %v741, 16
          %v747 = vmul.u32 %v743, %v745
          %v748 = vmul.u32 %v743, %v746
          %v749 = vmul.u32 %v744, %v745
          %v750 = vmul.u32 %v744, %v746
          %v751 = vshll.u32 %v748, 16
          %v752 = vshrl.u32 %v748, 16
          %v753 = vshll.u32 %v749, 16
          %v754 = vshrl.u32 %v749, 16
          %vm755 = vc.u32 %v747, %v751
          %v756 = vsel %vm755, 1, 0
          %v757 = vadd.s32 %v747, %v751
          %v758 = vadd.s32 %v750, %v756
          %vm759 = vc.u32 %v757, %v753
          %v760 = vsel %vm759, 1, 0
          %v761 = vadd.s32 %v757, %v753
          %v762 = vadd.s32 %v758, %v760
          %v763 = vadd.s32 %v762, %v752
          %v764 = vadd.s32 %v763, %v754
          %v765 = vand.u32 %v742, 65535
          %v766 = vshrl.u32 %v742, 16
          %v767 = vand.u32 %v737, 65535
          %v768 = vshrl.u32 %v737, 16
          %v769 = vmul.u32 %v765, %v767
          %v770 = vmul.u32 %v765, %v768
          %v771 = vmul.u32 %v766, %v767
          %v772 = vmul.u32 %v766, %v768
          %v773 = vshll.u32 %v770, 16
          %v774 = vshrl.u32 %v770, 16
          %v775 = vshll.u32 %v771, 16
          %v776 = vshrl.u32 %v771, 16
          %vm777 = vc.u32 %v769, %v773
          %v778 = vsel %vm777, 1, 0
          %v779 = vadd.s32 %v769, %v773
          %v780 = vadd.s32 %v772, %v778
          %vm781 = vc.u32 %v779, %v775
          %v782 = vsel %vm781, 1, 0
          %v783 = vadd.s32 %v779, %v775
          %v784 = vadd.s32 %v780, %v782
          %v785 = vadd.s32 %v784, %v774
          %v786 = vadd.s32 %v785, %v776
          %v787 = vmul.u32 %v742, %v733
          %v788 = vadd.s32 %v764, %v783
          %vm789 = vc.u32 %v764, %v783
          %v790 = vadd.s32 %v786, 1
          %v791 = vsel %vm789, %v790, %v786
          %v792 = vadd.s32 %v787, %v791
          %v793 = vadd.s32 %v792, 536870912
          %v794 = vshrl.u32 %v793, 30
          %v795 = vshll.u32 %v794, 30
          %v796 = vsub.s32 %v792, %v795
          %vm797 = vcmp.lt.s32.totalorder %v796, 0
          %v798 = vsub.s32 0, %v796
          %v799 = vsel %vm797, %v798, %v796
          %v800 = vclz %v799
          %v801 = vsub.s32 %v800, 2
          %vm802 = vcmp.gt.s32.totalorder 0, %v801
          %v803 = vsel %vm802, 0, %v801
          %v804 = vsub.s32 32, %v803
          %v805 = vshll.u32 %v796, %v803
          %v806 = vshrl.u32 %v788, %v804
          %v807 = vor.u32 %v805, %v806
          %v808 = vsub.s32 4294967266, %v803
          %v809 = vadd.s32 %v808, 127
          %v810 = vshll.u32 %v809, 23
          %v811 = vor.u32 4788187, %v810
          %v812 = vand.u32 2147483647, %v811
          %v814 = vcvt.s32.f32 %v807
          %v815 = vmul.f32 %v814, %v812
          %v816 = vxor.u32 %v815, 2147483648
          %v817 = vsel %vm696, %v816, %v815
          %v818 = vsub.s32 4, %v794
          %v819 = vsel %vm696, %v818, %v794
          %v820 = vsel %vm695, %v223, %v817
          %v821 = vsel %vm695, 0, %v819
          %v822 = vmul.f32 %v820, %v820
          %v823 = vmul.f32 %v822, -0.001358992
          %v824 = vadd.f32 %v823, 0.041655596
          %v825 = vmul.f32 %v822, %v824
          %v826 = vadd.f32 %v825, -0.4999988
          %v827 = vmul.f32 %v822, %v826
          %v828 = vadd.f32 1.0, %v827
          %v829 = vmul.f32 %v820, %v820
          %v830 = vmul.f32 %v829, -0.00019511016
          %v831 = vadd.f32 %v830, 0.008332121
          %v832 = vmul.f32 %v829, %v831
          %v833 = vadd.f32 %v832, -0.16666654
          %v834 = vmul.f32 %v829, %v833
          %v835 = vadd.f32 %v834, 1.0
          %v836 = vmul.f32 %v835, %v820
          %vm837 = vweird.f32 %v223
          %v838 = vadd.s32 %v821, 3
          %v839 = vand.u32 %v838, 3
          %vm840 = vcmp.lt.s32.totalorder %v839, 2
          %vm841 = vcmp.eq.s32.totalorder %v839, 0
          %v842 = vxor.u32 %v836, 2147483648
          %v843 = vsel %vm841, %v828, %v842
          %vm844 = vcmp.eq.s32.totalorder %v839, 2
          %v845 = vxor.u32 %v828, 2147483648
          %v846 = vsel %vm844, %v845, %v836
          %v847 = vsel %vm840, %v843, %v846
          %v848 = vsel %vm837, nan, %v847
          %849 = vst [vmem:[%s151] sm:$0xff] %v383
          %850 = vst [vmem:[%s151 + $0x8] sm:$0xff] %v538
          %851 = vst [vmem:[%s151 + $0x10] sm:$0xff] %v693
          %852 = vst [vmem:[%s151 + $0x18] sm:$0xff] %v848
        $region32: #{_gfft_forward.1} parent=27 // pred_fallthru
          _
        %p853 = scmp.ge.s32.totalorder %s20, 1
        // Predicated region
        $region33: #{_gfft_forward.1} parent=27 // pred_check
          %p854 = pneg %p853
        $region34: #{_gfft_forward.1} parent=27 // pred_check_branch
          %856 = sbr.rel (%p854) target = $region36
        $region35: #{_gfft_forward.1} parent=27 // pred_region
          %v857 = vand.u32 2147483647, %v197
          %vm858 = vcmp.le.f32.partialorder %v857, 0.7853982
          %vm859 = vcmp.lt.s32.totalorder %v197, 0
          %v860 = vand.u32 %v197, 2139095040
          %v861 = vshrl.u32 %v860, 23
          %v862 = vsub.s32 %v861, 127
          %v863 = vand.u32 2147483647, %v197
          %v864 = vand.u32 %v863, 8388607
          %v865 = vor.u32 %v864, 8388608
          %v866 = vsub.s32 0, %v865
          %v867 = vadd.s32 %v862, 1
          %vm868 = vcmp.gt.s32.totalorder %v867, 0
          %v869 = vsel %vm868, %v867, 0
          %v870 = vshrl.u32 %v869, 5
          %v871 = vand.u32 %v869, 31
          %v872 = vsub.s32 32, %v871
          %v873 = vshrl.u32 683565275, %v872
          %v874 = vshll.u32 683565275, %v871
          %v875 = vshrl.u32 2475754826, %v872
          %v876 = vor.u32 %v874, %v875
          %v877 = vshll.u32 2475754826, %v871
          %v878 = vshrl.u32 2131351028, %v872
          %v879 = vor.u32 %v877, %v878
          %v880 = vshll.u32 2131351028, %v871
          %v881 = vshrl.u32 2102212464, %v872
          %v882 = vor.u32 %v880, %v881
          %v883 = vshll.u32 2102212464, %v871
          %v884 = vshrl.u32 920167782, %v872
          %v885 = vor.u32 %v883, %v884
          %v886 = vshll.u32 920167782, %v871
          %v887 = vshrl.u32 1326507024, %v872
          %v888 = vor.u32 %v886, %v887
          %vm889 = vcmp.lt.s32.totalorder %v870, 1
          %vm890 = vcmp.lt.s32.totalorder %v870, 2
          %vm891 = vcmp.lt.s32.totalorder %v870, 3
          %vm892 = vcmp.lt.s32.totalorder %v870, 4
          %v893 = vsel %vm889, %v873, %v876
          %v894 = vsel %vm892, %v882, 2102212464
          %v895 = vsel %vm891, %v879, %v894
          %v896 = vsel %vm890, %v893, %v895
          %v897 = vsel %vm889, %v876, %v879
          %v898 = vsel %vm892, %v885, 920167782
          %v899 = vsel %vm891, %v882, %v898
          %v900 = vsel %vm890, %v897, %v899
          %v901 = vsel %vm889, %v879, %v882
          %v902 = vsel %vm892, %v888, 1326507024
          %v903 = vsel %vm891, %v885, %v902
          %v904 = vsel %vm890, %v901, %v903
          %v905 = vshll.u32 %v865, 8
          %v906 = vand.u32 %v905, 65535
          %v907 = vshrl.u32 %v905, 16
          %v908 = vand.u32 %v904, 65535
          %v909 = vshrl.u32 %v904, 16
          %v910 = vmul.u32 %v906, %v908
          %v911 = vmul.u32 %v906, %v909
          %v912 = vmul.u32 %v907, %v908
          %v913 = vmul.u32 %v907, %v909
          %v914 = vshll.u32 %v911, 16
          %v915 = vshrl.u32 %v911, 16
          %v916 = vshll.u32 %v912, 16
          %v917 = vshrl.u32 %v912, 16
          %vm918 = vc.u32 %v910, %v914
          %v919 = vsel %vm918, 1, 0
          %v920 = vadd.s32 %v910, %v914
          %v921 = vadd.s32 %v913, %v919
          %vm922 = vc.u32 %v920, %v916
          %v923 = vsel %vm922, 1, 0
          %v924 = vadd.s32 %v920, %v916
          %v925 = vadd.s32 %v921, %v923
          %v926 = vadd.s32 %v925, %v915
          %v927 = vadd.s32 %v926, %v917
          %v928 = vand.u32 %v905, 65535
          %v929 = vshrl.u32 %v905, 16
          %v930 = vand.u32 %v900, 65535
          %v931 = vshrl.u32 %v900, 16
          %v932 = vmul.u32 %v928, %v930
          %v933 = vmul.u32 %v928, %v931
          %v934 = vmul.u32 %v929, %v930
          %v935 = vmul.u32 %v929, %v931
          %v936 = vshll.u32 %v933, 16
          %v937 = vshrl.u32 %v933, 16
          %v938 = vshll.u32 %v934, 16
          %v939 = vshrl.u32 %v934, 16
          %vm940 = vc.u32 %v932, %v936
          %v941 = vsel %vm940, 1, 0
          %v942 = vadd.s32 %v932, %v936
          %v943 = vadd.s32 %v935, %v941
          %vm944 = vc.u32 %v942, %v938
          %v945 = vsel %vm944, 1, 0
          %v946 = vadd.s32 %v942, %v938
          %v947 = vadd.s32 %v943, %v945
          %v948 = vadd.s32 %v947, %v937
          %v949 = vadd.s32 %v948, %v939
          %v950 = vmul.u32 %v905, %v896
          %v951 = vadd.s32 %v927, %v946
          %vm952 = vc.u32 %v927, %v946
          %v953 = vadd.s32 %v949, 1
          %v954 = vsel %vm952, %v953, %v949
          %v955 = vadd.s32 %v950, %v954
          %v956 = vadd.s32 %v955, 536870912
          %v957 = vshrl.u32 %v956, 30
          %v958 = vshll.u32 %v957, 30
          %v959 = vsub.s32 %v955, %v958
          %vm960 = vcmp.lt.s32.totalorder %v959, 0
          %v961 = vsub.s32 0, %v959
          %v962 = vsel %vm960, %v961, %v959
          %v963 = vclz %v962
          %v964 = vsub.s32 %v963, 2
          %vm965 = vcmp.gt.s32.totalorder 0, %v964
          %v966 = vsel %vm965, 0, %v964
          %v967 = vsub.s32 32, %v966
          %v968 = vshll.u32 %v959, %v966
          %v969 = vshrl.u32 %v951, %v967
          %v970 = vor.u32 %v968, %v969
          %v971 = vsub.s32 4294967266, %v966
          %v972 = vadd.s32 %v971, 127
          %v973 = vshll.u32 %v972, 23
          %v974 = vor.u32 4788187, %v973
          %v975 = vand.u32 2147483647, %v974
          %v977 = vcvt.s32.f32 %v970
          %v978 = vmul.f32 %v977, %v975
          %v979 = vxor.u32 %v978, 2147483648
          %v980 = vsel %vm859, %v979, %v978
          %v981 = vsub.s32 4, %v957
          %v982 = vsel %vm859, %v981, %v957
          %v983 = vsel %vm858, %v197, %v980
          %v984 = vsel %vm858, 0, %v982
          %v985 = vmul.f32 %v983, %v983
          %v986 = vmul.f32 %v985, -0.001358992
          %v987 = vadd.f32 %v986, 0.041655596
          %v988 = vmul.f32 %v985, %v987
          %v989 = vadd.f32 %v988, -0.4999988
          %v990 = vmul.f32 %v985, %v989
          %v991 = vadd.f32 1.0, %v990
          %v992 = vmul.f32 %v983, %v983
          %v993 = vmul.f32 %v992, -0.00019511016
          %v994 = vadd.f32 %v993, 0.008332121
          %v995 = vmul.f32 %v992, %v994
          %v996 = vadd.f32 %v995, -0.16666654
          %v997 = vmul.f32 %v992, %v996
          %v998 = vadd.f32 %v997, 1.0
          %v999 = vmul.f32 %v998, %v983
          %vm1000 = vweird.f32 %v197
          %v1001 = vand.u32 %v984, 3
          %vm1002 = vcmp.lt.s32.totalorder %v1001, 2
          %vm1003 = vcmp.eq.s32.totalorder %v1001, 0
          %v1004 = vxor.u32 %v999, 2147483648
          %v1005 = vsel %vm1003, %v991, %v1004
          %vm1006 = vcmp.eq.s32.totalorder %v1001, 2
          %v1007 = vxor.u32 %v991, 2147483648
          %v1008 = vsel %vm1006, %v1007, %v999
          %v1009 = vsel %vm1002, %v1005, %v1008
          %v1010 = vsel %vm1000, nan, %v1009
          %v1011 = vand.u32 2147483647, %v220
          %vm1012 = vcmp.le.f32.partialorder %v1011, 0.7853982
          %vm1013 = vcmp.lt.s32.totalorder %v220, 0
          %v1014 = vand.u32 %v220, 2139095040
          %v1015 = vshrl.u32 %v1014, 23
          %v1016 = vsub.s32 %v1015, 127
          %v1017 = vand.u32 2147483647, %v220
          %v1018 = vand.u32 %v1017, 8388607
          %v1019 = vor.u32 %v1018, 8388608
          %v1020 = vsub.s32 0, %v1019
          %v1021 = vadd.s32 %v1016, 1
          %vm1022 = vcmp.gt.s32.totalorder %v1021, 0
          %v1023 = vsel %vm1022, %v1021, 0
          %v1024 = vshrl.u32 %v1023, 5
          %v1025 = vand.u32 %v1023, 31
          %v1026 = vsub.s32 32, %v1025
          %v1027 = vshrl.u32 683565275, %v1026
          %v1028 = vshll.u32 683565275, %v1025
          %v1029 = vshrl.u32 2475754826, %v1026
          %v1030 = vor.u32 %v1028, %v1029
          %v1031 = vshll.u32 2475754826, %v1025
          %v1032 = vshrl.u32 2131351028, %v1026
          %v1033 = vor.u32 %v1031, %v1032
          %v1034 = vshll.u32 2131351028, %v1025
          %v1035 = vshrl.u32 2102212464, %v1026
          %v1036 = vor.u32 %v1034, %v1035
          %v1037 = vshll.u32 2102212464, %v1025
          %v1038 = vshrl.u32 920167782, %v1026
          %v1039 = vor.u32 %v1037, %v1038
          %v1040 = vshll.u32 920167782, %v1025
          %v1041 = vshrl.u32 1326507024, %v1026
          %v1042 = vor.u32 %v1040, %v1041
          %vm1043 = vcmp.lt.s32.totalorder %v1024, 1
          %vm1044 = vcmp.lt.s32.totalorder %v1024, 2
          %vm1045 = vcmp.lt.s32.totalorder %v1024, 3
          %vm1046 = vcmp.lt.s32.totalorder %v1024, 4
          %v1047 = vsel %vm1043, %v1027, %v1030
          %v1048 = vsel %vm1046, %v1036, 2102212464
          %v1049 = vsel %vm1045, %v1033, %v1048
          %v1050 = vsel %vm1044, %v1047, %v1049
          %v1051 = vsel %vm1043, %v1030, %v1033
          %v1052 = vsel %vm1046, %v1039, 920167782
          %v1053 = vsel %vm1045, %v1036, %v1052
          %v1054 = vsel %vm1044, %v1051, %v1053
          %v1055 = vsel %vm1043, %v1033, %v1036
          %v1056 = vsel %vm1046, %v1042, 1326507024
          %v1057 = vsel %vm1045, %v1039, %v1056
          %v1058 = vsel %vm1044, %v1055, %v1057
          %v1059 = vshll.u32 %v1019, 8
          %v1060 = vand.u32 %v1059, 65535
          %v1061 = vshrl.u32 %v1059, 16
          %v1062 = vand.u32 %v1058, 65535
          %v1063 = vshrl.u32 %v1058, 16
          %v1064 = vmul.u32 %v1060, %v1062
          %v1065 = vmul.u32 %v1060, %v1063
          %v1066 = vmul.u32 %v1061, %v1062
          %v1067 = vmul.u32 %v1061, %v1063
          %v1068 = vshll.u32 %v1065, 16
          %v1069 = vshrl.u32 %v1065, 16
          %v1070 = vshll.u32 %v1066, 16
          %v1071 = vshrl.u32 %v1066, 16
          %vm1072 = vc.u32 %v1064, %v1068
          %v1073 = vsel %vm1072, 1, 0
          %v1074 = vadd.s32 %v1064, %v1068
          %v1075 = vadd.s32 %v1067, %v1073
          %vm1076 = vc.u32 %v1074, %v1070
          %v1077 = vsel %vm1076, 1, 0
          %v1078 = vadd.s32 %v1074, %v1070
          %v1079 = vadd.s32 %v1075, %v1077
          %v1080 = vadd.s32 %v1079, %v1069
          %v1081 = vadd.s32 %v1080, %v1071
          %v1082 = vand.u32 %v1059, 65535
          %v1083 = vshrl.u32 %v1059, 16
          %v1084 = vand.u32 %v1054, 65535
          %v1085 = vshrl.u32 %v1054, 16
          %v1086 = vmul.u32 %v1082, %v1084
          %v1087 = vmul.u32 %v1082, %v1085
          %v1088 = vmul.u32 %v1083, %v1084
          %v1089 = vmul.u32 %v1083, %v1085
          %v1090 = vshll.u32 %v1087, 16
          %v1091 = vshrl.u32 %v1087, 16
          %v1092 = vshll.u32 %v1088, 16
          %v1093 = vshrl.u32 %v1088, 16
          %vm1094 = vc.u32 %v1086, %v1090
          %v1095 = vsel %vm1094, 1, 0
          %v1096 = vadd.s32 %v1086, %v1090
          %v1097 = vadd.s32 %v1089, %v1095
          %vm1098 = vc.u32 %v1096, %v1092
          %v1099 = vsel %vm1098, 1, 0
          %v1100 = vadd.s32 %v1096, %v1092
          %v1101 = vadd.s32 %v1097, %v1099
          %v1102 = vadd.s32 %v1101, %v1091
          %v1103 = vadd.s32 %v1102, %v1093
          %v1104 = vmul.u32 %v1059, %v1050
          %v1105 = vadd.s32 %v1081, %v1100
          %vm1106 = vc.u32 %v1081, %v1100
          %v1107 = vadd.s32 %v1103, 1
          %v1108 = vsel %vm1106, %v1107, %v1103
          %v1109 = vadd.s32 %v1104, %v1108
          %v1110 = vadd.s32 %v1109, 536870912
          %v1111 = vshrl.u32 %v1110, 30
          %v1112 = vshll.u32 %v1111, 30
          %v1113 = vsub.s32 %v1109, %v1112
          %vm1114 = vcmp.lt.s32.totalorder %v1113, 0
          %v1115 = vsub.s32 0, %v1113
          %v1116 = vsel %vm1114, %v1115, %v1113
          %v1117 = vclz %v1116
          %v1118 = vsub.s32 %v1117, 2
          %vm1119 = vcmp.gt.s32.totalorder 0, %v1118
          %v1120 = vsel %vm1119, 0, %v1118
          %v1121 = vsub.s32 32, %v1120
          %v1122 = vshll.u32 %v1113, %v1120
          %v1123 = vshrl.u32 %v1105, %v1121
          %v1124 = vor.u32 %v1122, %v1123
          %v1125 = vsub.s32 4294967266, %v1120
          %v1126 = vadd.s32 %v1125, 127
          %v1127 = vshll.u32 %v1126, 23
          %v1128 = vor.u32 4788187, %v1127
          %v1129 = vand.u32 2147483647, %v1128
          %v1131 = vcvt.s32.f32 %v1124
          %v1132 = vmul.f32 %v1131, %v1129
          %v1133 = vxor.u32 %v1132, 2147483648
          %v1134 = vsel %vm1013, %v1133, %v1132
          %v1135 = vsub.s32 4, %v1111
          %v1136 = vsel %vm1013, %v1135, %v1111
          %v1137 = vsel %vm1012, %v220, %v1134
          %v1138 = vsel %vm1012, 0, %v1136
          %v1139 = vmul.f32 %v1137, %v1137
          %v1140 = vmul.f32 %v1139, -0.001358992
          %v1141 = vadd.f32 %v1140, 0.041655596
          %v1142 = vmul.f32 %v1139, %v1141
          %v1143 = vadd.f32 %v1142, -0.4999988
          %v1144 = vmul.f32 %v1139, %v1143
          %v1145 = vadd.f32 1.0, %v1144
          %v1146 = vmul.f32 %v1137, %v1137
          %v1147 = vmul.f32 %v1146, -0.00019511016
          %v1148 = vadd.f32 %v1147, 0.008332121
          %v1149 = vmul.f32 %v1146, %v1148
          %v1150 = vadd.f32 %v1149, -0.16666654
          %v1151 = vmul.f32 %v1146, %v1150
          %v1152 = vadd.f32 %v1151, 1.0
          %v1153 = vmul.f32 %v1152, %v1137
          %vm1154 = vweird.f32 %v220
          %v1155 = vand.u32 %v1138, 3
          %vm1156 = vcmp.lt.s32.totalorder %v1155, 2
          %vm1157 = vcmp.eq.s32.totalorder %v1155, 0
          %v1158 = vxor.u32 %v1153, 2147483648
          %v1159 = vsel %vm1157, %v1145, %v1158
          %vm1160 = vcmp.eq.s32.totalorder %v1155, 2
          %v1161 = vxor.u32 %v1145, 2147483648
          %v1162 = vsel %vm1160, %v1161, %v1153
          %v1163 = vsel %vm1156, %v1159, %v1162
          %v1164 = vsel %vm1154, nan, %v1163
          %v1165 = vand.u32 2147483647, %v200
          %vm1166 = vcmp.le.f32.partialorder %v1165, 0.7853982
          %vm1167 = vcmp.lt.s32.totalorder %v200, 0
          %v1168 = vand.u32 %v200, 2139095040
          %v1169 = vshrl.u32 %v1168, 23
          %v1170 = vsub.s32 %v1169, 127
          %v1171 = vand.u32 2147483647, %v200
          %v1172 = vand.u32 %v1171, 8388607
          %v1173 = vor.u32 %v1172, 8388608
          %v1174 = vsub.s32 0, %v1173
          %v1175 = vadd.s32 %v1170, 1
          %vm1176 = vcmp.gt.s32.totalorder %v1175, 0
          %v1177 = vsel %vm1176, %v1175, 0
          %v1178 = vshrl.u32 %v1177, 5
          %v1179 = vand.u32 %v1177, 31
          %v1180 = vsub.s32 32, %v1179
          %v1181 = vshrl.u32 683565275, %v1180
          %v1182 = vshll.u32 683565275, %v1179
          %v1183 = vshrl.u32 2475754826, %v1180
          %v1184 = vor.u32 %v1182, %v1183
          %v1185 = vshll.u32 2475754826, %v1179
          %v1186 = vshrl.u32 2131351028, %v1180
          %v1187 = vor.u32 %v1185, %v1186
          %v1188 = vshll.u32 2131351028, %v1179
          %v1189 = vshrl.u32 2102212464, %v1180
          %v1190 = vor.u32 %v1188, %v1189
          %v1191 = vshll.u32 2102212464, %v1179
          %v1192 = vshrl.u32 920167782, %v1180
          %v1193 = vor.u32 %v1191, %v1192
          %v1194 = vshll.u32 920167782, %v1179
          %v1195 = vshrl.u32 1326507024, %v1180
          %v1196 = vor.u32 %v1194, %v1195
          %vm1197 = vcmp.lt.s32.totalorder %v1178, 1
          %vm1198 = vcmp.lt.s32.totalorder %v1178, 2
          %vm1199 = vcmp.lt.s32.totalorder %v1178, 3
          %vm1200 = vcmp.lt.s32.totalorder %v1178, 4
          %v1201 = vsel %vm1197, %v1181, %v1184
          %v1202 = vsel %vm1200, %v1190, 2102212464
          %v1203 = vsel %vm1199, %v1187, %v1202
          %v1204 = vsel %vm1198, %v1201, %v1203
          %v1205 = vsel %vm1197, %v1184, %v1187
          %v1206 = vsel %vm1200, %v1193, 920167782
          %v1207 = vsel %vm1199, %v1190, %v1206
          %v1208 = vsel %vm1198, %v1205, %v1207
          %v1209 = vsel %vm1197, %v1187, %v1190
          %v1210 = vsel %vm1200, %v1196, 1326507024
          %v1211 = vsel %vm1199, %v1193, %v1210
          %v1212 = vsel %vm1198, %v1209, %v1211
          %v1213 = vshll.u32 %v1173, 8
          %v1214 = vand.u32 %v1213, 65535
          %v1215 = vshrl.u32 %v1213, 16
          %v1216 = vand.u32 %v1212, 65535
          %v1217 = vshrl.u32 %v1212, 16
          %v1218 = vmul.u32 %v1214, %v1216
          %v1219 = vmul.u32 %v1214, %v1217
          %v1220 = vmul.u32 %v1215, %v1216
          %v1221 = vmul.u32 %v1215, %v1217
          %v1222 = vshll.u32 %v1219, 16
          %v1223 = vshrl.u32 %v1219, 16
          %v1224 = vshll.u32 %v1220, 16
          %v1225 = vshrl.u32 %v1220, 16
          %vm1226 = vc.u32 %v1218, %v1222
          %v1227 = vsel %vm1226, 1, 0
          %v1228 = vadd.s32 %v1218, %v1222
          %v1229 = vadd.s32 %v1221, %v1227
          %vm1230 = vc.u32 %v1228, %v1224
          %v1231 = vsel %vm1230, 1, 0
          %v1232 = vadd.s32 %v1228, %v1224
          %v1233 = vadd.s32 %v1229, %v1231
          %v1234 = vadd.s32 %v1233, %v1223
          %v1235 = vadd.s32 %v1234, %v1225
          %v1236 = vand.u32 %v1213, 65535
          %v1237 = vshrl.u32 %v1213, 16
          %v1238 = vand.u32 %v1208, 65535
          %v1239 = vshrl.u32 %v1208, 16
          %v1240 = vmul.u32 %v1236, %v1238
          %v1241 = vmul.u32 %v1236, %v1239
          %v1242 = vmul.u32 %v1237, %v1238
          %v1243 = vmul.u32 %v1237, %v1239
          %v1244 = vshll.u32 %v1241, 16
          %v1245 = vshrl.u32 %v1241, 16
          %v1246 = vshll.u32 %v1242, 16
          %v1247 = vshrl.u32 %v1242, 16
          %vm1248 = vc.u32 %v1240, %v1244
          %v1249 = vsel %vm1248, 1, 0
          %v1250 = vadd.s32 %v1240, %v1244
          %v1251 = vadd.s32 %v1243, %v1249
          %vm1252 = vc.u32 %v1250, %v1246
          %v1253 = vsel %vm1252, 1, 0
          %v1254 = vadd.s32 %v1250, %v1246
          %v1255 = vadd.s32 %v1251, %v1253
          %v1256 = vadd.s32 %v1255, %v1245
          %v1257 = vadd.s32 %v1256, %v1247
          %v1258 = vmul.u32 %v1213, %v1204
          %v1259 = vadd.s32 %v1235, %v1254
          %vm1260 = vc.u32 %v1235, %v1254
          %v1261 = vadd.s32 %v1257, 1
          %v1262 = vsel %vm1260, %v1261, %v1257
          %v1263 = vadd.s32 %v1258, %v1262
          %v1264 = vadd.s32 %v1263, 536870912
          %v1265 = vshrl.u32 %v1264, 30
          %v1266 = vshll.u32 %v1265, 30
          %v1267 = vsub.s32 %v1263, %v1266
          %vm1268 = vcmp.lt.s32.totalorder %v1267, 0
          %v1269 = vsub.s32 0, %v1267
          %v1270 = vsel %vm1268, %v1269, %v1267
          %v1271 = vclz %v1270
          %v1272 = vsub.s32 %v1271, 2
          %vm1273 = vcmp.gt.s32.totalorder 0, %v1272
          %v1274 = vsel %vm1273, 0, %v1272
          %v1275 = vsub.s32 32, %v1274
          %v1276 = vshll.u32 %v1267, %v1274
          %v1277 = vshrl.u32 %v1259, %v1275
          %v1278 = vor.u32 %v1276, %v1277
          %v1279 = vsub.s32 4294967266, %v1274
          %v1280 = vadd.s32 %v1279, 127
          %v1281 = vshll.u32 %v1280, 23
          %v1282 = vor.u32 4788187, %v1281
          %v1283 = vand.u32 2147483647, %v1282
          %v1285 = vcvt.s32.f32 %v1278
          %v1286 = vmul.f32 %v1285, %v1283
          %v1287 = vxor.u32 %v1286, 2147483648
          %v1288 = vsel %vm1167, %v1287, %v1286
          %v1289 = vsub.s32 4, %v1265
          %v1290 = vsel %vm1167, %v1289, %v1265
          %v1291 = vsel %vm1166, %v200, %v1288
          %v1292 = vsel %vm1166, 0, %v1290
          %v1293 = vmul.f32 %v1291, %v1291
          %v1294 = vmul.f32 %v1293, -0.001358992
          %v1295 = vadd.f32 %v1294, 0.041655596
          %v1296 = vmul.f32 %v1293, %v1295
          %v1297 = vadd.f32 %v1296, -0.4999988
          %v1298 = vmul.f32 %v1293, %v1297
          %v1299 = vadd.f32 1.0, %v1298
          %v1300 = vmul.f32 %v1291, %v1291
          %v1301 = vmul.f32 %v1300, -0.00019511016
          %v1302 = vadd.f32 %v1301, 0.008332121
          %v1303 = vmul.f32 %v1300, %v1302
          %v1304 = vadd.f32 %v1303, -0.16666654
          %v1305 = vmul.f32 %v1300, %v1304
          %v1306 = vadd.f32 %v1305, 1.0
          %v1307 = vmul.f32 %v1306, %v1291
          %vm1308 = vweird.f32 %v200
          %v1309 = vand.u32 %v1292, 3
          %vm1310 = vcmp.lt.s32.totalorder %v1309, 2
          %vm1311 = vcmp.eq.s32.totalorder %v1309, 0
          %v1312 = vxor.u32 %v1307, 2147483648
          %v1313 = vsel %vm1311, %v1299, %v1312
          %vm1314 = vcmp.eq.s32.totalorder %v1309, 2
          %v1315 = vxor.u32 %v1299, 2147483648
          %v1316 = vsel %vm1314, %v1315, %v1307
          %v1317 = vsel %vm1310, %v1313, %v1316
          %v1318 = vsel %vm1308, nan, %v1317
          %v1319 = vand.u32 2147483647, %v223
          %vm1320 = vcmp.le.f32.partialorder %v1319, 0.7853982
          %vm1321 = vcmp.lt.s32.totalorder %v223, 0
          %v1322 = vand.u32 %v223, 2139095040
          %v1323 = vshrl.u32 %v1322, 23
          %v1324 = vsub.s32 %v1323, 127
          %v1325 = vand.u32 2147483647, %v223
          %v1326 = vand.u32 %v1325, 8388607
          %v1327 = vor.u32 %v1326, 8388608
          %v1328 = vsub.s32 0, %v1327
          %v1329 = vadd.s32 %v1324, 1
          %vm1330 = vcmp.gt.s32.totalorder %v1329, 0
          %v1331 = vsel %vm1330, %v1329, 0
          %v1332 = vshrl.u32 %v1331, 5
          %v1333 = vand.u32 %v1331, 31
          %v1334 = vsub.s32 32, %v1333
          %v1335 = vshrl.u32 683565275, %v1334
          %v1336 = vshll.u32 683565275, %v1333
          %v1337 = vshrl.u32 2475754826, %v1334
          %v1338 = vor.u32 %v1336, %v1337
          %v1339 = vshll.u32 2475754826, %v1333
          %v1340 = vshrl.u32 2131351028, %v1334
          %v1341 = vor.u32 %v1339, %v1340
          %v1342 = vshll.u32 2131351028, %v1333
          %v1343 = vshrl.u32 2102212464, %v1334
          %v1344 = vor.u32 %v1342, %v1343
          %v1345 = vshll.u32 2102212464, %v1333
          %v1346 = vshrl.u32 920167782, %v1334
          %v1347 = vor.u32 %v1345, %v1346
          %v1348 = vshll.u32 920167782, %v1333
          %v1349 = vshrl.u32 1326507024, %v1334
          %v1350 = vor.u32 %v1348, %v1349
          %vm1351 = vcmp.lt.s32.totalorder %v1332, 1
          %vm1352 = vcmp.lt.s32.totalorder %v1332, 2
          %vm1353 = vcmp.lt.s32.totalorder %v1332, 3
          %vm1354 = vcmp.lt.s32.totalorder %v1332, 4
          %v1355 = vsel %vm1351, %v1335, %v1338
          %v1356 = vsel %vm1354, %v1344, 2102212464
          %v1357 = vsel %vm1353, %v1341, %v1356
          %v1358 = vsel %vm1352, %v1355, %v1357
          %v1359 = vsel %vm1351, %v1338, %v1341
          %v1360 = vsel %vm1354, %v1347, 920167782
          %v1361 = vsel %vm1353, %v1344, %v1360
          %v1362 = vsel %vm1352, %v1359, %v1361
          %v1363 = vsel %vm1351, %v1341, %v1344
          %v1364 = vsel %vm1354, %v1350, 1326507024
          %v1365 = vsel %vm1353, %v1347, %v1364
          %v1366 = vsel %vm1352, %v1363, %v1365
          %v1367 = vshll.u32 %v1327, 8
          %v1368 = vand.u32 %v1367, 65535
          %v1369 = vshrl.u32 %v1367, 16
          %v1370 = vand.u32 %v1366, 65535
          %v1371 = vshrl.u32 %v1366, 16
          %v1372 = vmul.u32 %v1368, %v1370
          %v1373 = vmul.u32 %v1368, %v1371
          %v1374 = vmul.u32 %v1369, %v1370
          %v1375 = vmul.u32 %v1369, %v1371
          %v1376 = vshll.u32 %v1373, 16
          %v1377 = vshrl.u32 %v1373, 16
          %v1378 = vshll.u32 %v1374, 16
          %v1379 = vshrl.u32 %v1374, 16
          %vm1380 = vc.u32 %v1372, %v1376
          %v1381 = vsel %vm1380, 1, 0
          %v1382 = vadd.s32 %v1372, %v1376
          %v1383 = vadd.s32 %v1375, %v1381
          %vm1384 = vc.u32 %v1382, %v1378
          %v1385 = vsel %vm1384, 1, 0
          %v1386 = vadd.s32 %v1382, %v1378
          %v1387 = vadd.s32 %v1383, %v1385
          %v1388 = vadd.s32 %v1387, %v1377
          %v1389 = vadd.s32 %v1388, %v1379
          %v1390 = vand.u32 %v1367, 65535
          %v1391 = vshrl.u32 %v1367, 16
          %v1392 = vand.u32 %v1362, 65535
          %v1393 = vshrl.u32 %v1362, 16
          %v1394 = vmul.u32 %v1390, %v1392
          %v1395 = vmul.u32 %v1390, %v1393
          %v1396 = vmul.u32 %v1391, %v1392
          %v1397 = vmul.u32 %v1391, %v1393
          %v1398 = vshll.u32 %v1395, 16
          %v1399 = vshrl.u32 %v1395, 16
          %v1400 = vshll.u32 %v1396, 16
          %v1401 = vshrl.u32 %v1396, 16
          %vm1402 = vc.u32 %v1394, %v1398
          %v1403 = vsel %vm1402, 1, 0
          %v1404 = vadd.s32 %v1394, %v1398
          %v1405 = vadd.s32 %v1397, %v1403
          %vm1406 = vc.u32 %v1404, %v1400
          %v1407 = vsel %vm1406, 1, 0
          %v1408 = vadd.s32 %v1404, %v1400
          %v1409 = vadd.s32 %v1405, %v1407
          %v1410 = vadd.s32 %v1409, %v1399
          %v1411 = vadd.s32 %v1410, %v1401
          %v1412 = vmul.u32 %v1367, %v1358
          %v1413 = vadd.s32 %v1389, %v1408
          %vm1414 = vc.u32 %v1389, %v1408
          %v1415 = vadd.s32 %v1411, 1
          %v1416 = vsel %vm1414, %v1415, %v1411
          %v1417 = vadd.s32 %v1412, %v1416
          %v1418 = vadd.s32 %v1417, 536870912
          %v1419 = vshrl.u32 %v1418, 30
          %v1420 = vshll.u32 %v1419, 30
          %v1421 = vsub.s32 %v1417, %v1420
          %vm1422 = vcmp.lt.s32.totalorder %v1421, 0
          %v1423 = vsub.s32 0, %v1421
          %v1424 = vsel %vm1422, %v1423, %v1421
          %v1425 = vclz %v1424
          %v1426 = vsub.s32 %v1425, 2
          %vm1427 = vcmp.gt.s32.totalorder 0, %v1426
          %v1428 = vsel %vm1427, 0, %v1426
          %v1429 = vsub.s32 32, %v1428
          %v1430 = vshll.u32 %v1421, %v1428
          %v1431 = vshrl.u32 %v1413, %v1429
          %v1432 = vor.u32 %v1430, %v1431
          %v1433 = vsub.s32 4294967266, %v1428
          %v1434 = vadd.s32 %v1433, 127
          %v1435 = vshll.u32 %v1434, 23
          %v1436 = vor.u32 4788187, %v1435
          %v1437 = vand.u32 2147483647, %v1436
          %v1439 = vcvt.s32.f32 %v1432
          %v1440 = vmul.f32 %v1439, %v1437
          %v1441 = vxor.u32 %v1440, 2147483648
          %v1442 = vsel %vm1321, %v1441, %v1440
          %v1443 = vsub.s32 4, %v1419
          %v1444 = vsel %vm1321, %v1443, %v1419
          %v1445 = vsel %vm1320, %v223, %v1442
          %v1446 = vsel %vm1320, 0, %v1444
          %v1447 = vmul.f32 %v1445, %v1445
          %v1448 = vmul.f32 %v1447, -0.001358992
          %v1449 = vadd.f32 %v1448, 0.041655596
          %v1450 = vmul.f32 %v1447, %v1449
          %v1451 = vadd.f32 %v1450, -0.4999988
          %v1452 = vmul.f32 %v1447, %v1451
          %v1453 = vadd.f32 1.0, %v1452
          %v1454 = vmul.f32 %v1445, %v1445
          %v1455 = vmul.f32 %v1454, -0.00019511016
          %v1456 = vadd.f32 %v1455, 0.008332121
          %v1457 = vmul.f32 %v1454, %v1456
          %v1458 = vadd.f32 %v1457, -0.16666654
          %v1459 = vmul.f32 %v1454, %v1458
          %v1460 = vadd.f32 %v1459, 1.0
          %v1461 = vmul.f32 %v1460, %v1445
          %vm1462 = vweird.f32 %v223
          %v1463 = vand.u32 %v1446, 3
          %vm1464 = vcmp.lt.s32.totalorder %v1463, 2
          %vm1465 = vcmp.eq.s32.totalorder %v1463, 0
          %v1466 = vxor.u32 %v1461, 2147483648
          %v1467 = vsel %vm1465, %v1453, %v1466
          %vm1468 = vcmp.eq.s32.totalorder %v1463, 2
          %v1469 = vxor.u32 %v1453, 2147483648
          %v1470 = vsel %vm1468, %v1469, %v1461
          %v1471 = vsel %vm1464, %v1467, %v1470
          %v1472 = vsel %vm1462, nan, %v1471
          %1473 = vst [vmem:[%s151] sm:$0xff] %v1010
          %1474 = vst [vmem:[%s151 + $0x8] sm:$0xff] %v1164
          %1475 = vst [vmem:[%s151 + $0x10] sm:$0xff] %v1318
          %1476 = vst [vmem:[%s151 + $0x18] sm:$0xff] %v1472
        $region36: #{_gfft_forward.1} parent=27 // pred_fallthru
          _
        %s1477 = sand.u32 %s85, 1
        %s1478 = scalar_lea.sflag [#allocation3], %s1477
        %s1479 = sand.u32 %s85, 1
        %s1480 = smul.addr %s1479, 32
        %s1481 = scalar_lea.vmem [#allocation2], %s1480
        // Predicated region
        $region37: #{_gfft_forward.1} parent=27 // pred_check
          %p1482 = pneg %p95
        $region38: #{_gfft_forward.1} parent=27 // pred_check_branch
          %1484 = sbr.rel (%p1482) target = $region40
        $region39: #{_gfft_forward.1} parent=27 // pred_region
          %s1485 = smul.u32 2, %s21
          %s1486 = smul.u32 2, %s20
          %1488 = vsyncadd %s1478, 0
          %s1489 = smul.addr %s1485, 4
          %s1490 = sadd.s32 %s1486, %s1489
          %s1491 = smul.addr %s1490, 8
          %s1492 = scalar_lea.hbm %s2, %s1491
          %s1493 = sshll.u32 %s1481, 4
          %s1494 = int_to_ptr.vmem [resolvable:$true] %s1493
          %s1495 = sshll.u32 %s1492, 4
          %s1496 = int_to_ptr.hbm [resolvable:$true] %s1495
          %1501 = dma.vmem_to_hbm [thread:$0]  %s1494, 512, %s1496, %s1478, 256, 512, 16
        $region40: #{_gfft_forward.1} parent=27 // pred_fallthru
          _
      $region28: #{_gfft_forward.1} parent=5 // pred_fallthru
        _
      %p1502 = scmp.le.s32.totalorder 2, %s11
      // Predicated region
      $region41: #{_gfft_forward.1} parent=5 // pred_check
        %p1503 = pneg %p1502
      $region42: #{_gfft_forward.1} parent=5 // pred_check_branch
        %1505 = sbr.rel (%p1503) target = $region44
      $region43: #{_gfft_forward.1} parent=5 // pred_region
        %s1506 = ssub.s32 %s11, 2
        // Predicated region
        $region45: #{_gfft_forward.1} parent=43 // pred_check
          %p1507 = pneg %p101
        $region46: #{_gfft_forward.1} parent=43 // pred_check_branch
          %1509 = sbr.rel (%p1507) target = $region48
        $region47: #{_gfft_forward.1} parent=43 // pred_region
          %s1510 = sand.u32 %s86, 1
          %s1511 = scalar_lea.sflag [#allocation3], %s1510
          %s1512 = sand.u32 %s86, 1
          %s1513 = smul.addr %s1512, 32
          %s1514 = scalar_lea.vmem [#allocation2], %s1513
          %1516 = dma.done %s1511, 512
        $region48: #{_gfft_forward.1} parent=43 // pred_fallthru
          _
      $region44: #{_gfft_forward.1} parent=5 // pred_fallthru
        _
    $region6: #{_gfft_forward.1} parent=1 // loop_footer
      %s15 = sadd.s32 1, %s11
    $region7: #{_gfft_forward.1} parent=1 // loop_footer_branch
      %10 = sbr.rel target = $region3
    $region8: #{_gfft_forward.1} parent=1 // loop_exit
      _
    %1517 = vsyncpa [#allocation3], 1
    %s1518 = scalar_lea.sflag [#allocation3], 1
    %1519 = vsyncpa %s1518, 1

</llo_original>
